<compile_context>
chip_gen: v7x
topology: tpu7x:2x2x1
jax: 0.10.0
libtpu: 0.0.40
codegen_flags: <defaults>
</compile_context>

<pallas_src>
import functools

import jax
import jax.numpy as jnp
from jax import lax
from jax.experimental import pallas as pl
from jax.experimental.pallas import tpu as pltpu

LANE = 128
TILE_CAP = 1024   # near-roofline on all gens; 2048 viable on v7x if desired


def _round_up(v, m):
    return ((v + m - 1) // m) * m


def _plan(num_nodes):
    """Pick the node tile (used for rows and the reduction) and padded N.

    Pads N up to a multiple of the tile (instead of divisor-searching, which
    can degrade to 128-wide tiles), and caps the tile at ~N_pad/2 so the
    parallel row axis has >= 2 tiles for v7x's two TensorCores.
    """
    n128 = _round_up(max(num_nodes, 1), LANE)
    tile = min(TILE_CAP, n128)
    if n128 >= 2 * LANE:
        tile = min(tile, max(LANE, (n128 // 2) // LANE * LANE))
    n_pad = _round_up(n128, tile)
    return tile, n_pad


def _pad2(a, rows, cols):
    r, c = a.shape
    return jnp.pad(a, ((0, rows - r), (0, cols - c)))


# ----------------------------- Pallas kernels ------------------------------ #

def project_kernel(x_ref, w_ref, dinv_ref, o_ref):
    """XW' = D^{-1/2} * (X @ W); computed once per layer, stored bf16."""
    xw = jnp.dot(x_ref[...], w_ref[...], preferred_element_type=jnp.float32)
    o_ref[...] = (xw * dinv_ref[...]).astype(o_ref.dtype)


def aggregate_kernel(a_ref, xw_ref, dinv_ref, b_ref, o_ref, acc_ref, *,
                     activation, num_valid):
    """acc += (A+I)[i,k] @ XW'[k]; epilogue: D^{-1/2} row scale + bias + act."""
    k = pl.program_id(1)

    @pl.when(k == 0)
    def _():
        acc_ref[...] = jnp.zeros_like(acc_ref)

    # int8 edge counts -> bf16 in VMEM (exact for small counts); bf16 MXU dot
    # with f32 accumulation.  Widening in VMEM keeps this off any int MXU path.
    a_tile = a_ref[...].astype(jnp.float32).astype(jnp.bfloat16)
    acc_ref[...] += jnp.dot(a_tile, xw_ref[...],
                            preferred_element_type=jnp.float32)

    @pl.when(k == pl.num_programs(1) - 1)
    def _():
        h = acc_ref[...] * dinv_ref[...] + b_ref[...]
        if activation == "relu":
            o_ref[...] = jnp.maximum(h, 0.0).astype(o_ref.dtype)
        else:  # log_softmax over the valid (unpadded) class lanes only
            lane = lax.broadcasted_iota(jnp.int32, h.shape, 1)
            h = jnp.where(lane < num_valid, h, -jnp.inf)
            m = jnp.max(h, axis=1, keepdims=True)
            lse = jnp.log(jnp.sum(jnp.exp(h - m), axis=1, keepdims=True)) + m
            o_ref[...] = (h - lse).astype(o_ref.dtype)


# ------------------------------ Pallas wrappers ----------------------------- #

def project(x, w, dinv, tile):
    """Per-layer pre-projection: bf16 (N_pad, H_pad) = D^{-1/2} (X @ W)."""
    n_pad, f_pad = x.shape
    h_pad = w.shape[1]
    return pl.pallas_call(
        project_kernel,
        out_shape=jax.ShapeDtypeStruct((n_pad, h_pad), jnp.bfloat16),
        grid_spec=pltpu.PrefetchScalarGridSpec(
            num_scalar_prefetch=0,
            grid=(n_pad // tile,),
            in_specs=[
                pl.BlockSpec((tile, f_pad), lambda i: (i, 0)),      # X row tile
                pl.BlockSpec((f_pad, h_pad), lambda i: (0, 0)),     # W (untiled)
                pl.BlockSpec((tile, 1), lambda i: (i, 0)),          # deg^{-1/2}
            ],
            out_specs=pl.BlockSpec((tile, h_pad), lambda i: (i, 0)),
        ),
        compiler_params=pltpu.CompilerParams(
            dimension_semantics=("parallel",),
        ),
    )(x, w, dinv)


def aggregate(a_q, xw, dinv, b, tile, *, activation, num_valid, out_dtype):
    """act(D^{-1/2} (A+I) XW' + b) with XW' already column-scaled by D^{-1/2}."""
    n_pad = a_q.shape[0]
    h_pad = xw.shape[1]
    kernel = functools.partial(aggregate_kernel,
                               activation=activation, num_valid=num_valid)
    return pl.pallas_call(
        kernel,
        out_shape=jax.ShapeDtypeStruct((n_pad, h_pad), out_dtype),
        grid_spec=pltpu.PrefetchScalarGridSpec(
            num_scalar_prefetch=0,
            grid=(n_pad // tile, n_pad // tile),
            in_specs=[
                pl.BlockSpec((tile, tile), lambda i, k: (i, k)),    # (A+I) int8
                pl.BlockSpec((tile, h_pad), lambda i, k: (k, 0)),   # XW' k-tile
                pl.BlockSpec((tile, 1), lambda i, k: (i, 0)),       # deg^{-1/2}
                pl.BlockSpec((1, h_pad), lambda i, k: (0, 0)),      # bias
            ],
            out_specs=pl.BlockSpec((tile, h_pad), lambda i, k: (i, 0)),
            scratch_shapes=[pltpu.VMEM((tile, h_pad), jnp.float32)],
        ),
        compiler_params=pltpu.CompilerParams(
            dimension_semantics=("parallel", "arbitrary"),
        ),
    )(a_q, xw, dinv, b)


# -------------------------------- JAX glue ---------------------------------- #

def build_graph_operands(edge_index, num_nodes):
    """Pre-padded int8 (A+I) edge counts and f32 deg^{-1/2}, built ONCE.

    PyG gcn_norm semantics: A_hat = D^{-1/2} (A + I) D^{-1/2} with in-degree.
    Counts are exact small integers, so int8 storage is lossless; the D^{-1/2}
    factors are applied inside the kernels.
    """
    _, n_pad = _plan(num_nodes)
    src = edge_index[0]
    dst = edge_index[1]
    loop = jnp.arange(num_nodes, dtype=edge_index.dtype)
    src = jnp.concatenate([src, loop])
    dst = jnp.concatenate([dst, loop])
    counts = jnp.zeros((num_nodes, num_nodes), jnp.float32).at[dst, src].add(1.0)
    deg = jnp.sum(counts, axis=1)                      # in-degree incl. self loop
    dinv = jnp.where(deg > 0, lax.rsqrt(deg), 0.0)
    # Clip to int8 range (multi-edge counts > 127 would wrap; not expected).
    a_q = _pad2(jnp.minimum(counts, 127.0), n_pad, n_pad).astype(jnp.int8)
    dinv_p = _pad2(dinv.reshape(-1, 1), n_pad, 1).astype(jnp.float32)
    return a_q, dinv_p


def glorot(key, shape):
    fan_in, fan_out = shape
    limit = jnp.sqrt(6.0 / (fan_in + fan_out))
    return jax.random.uniform(key, shape, jnp.float32, -limit, limit)


@jax.jit
def gcn_forward(x, a_q, dinv, w1, b1, w2, b2):
    n, f_in = x.shape
    hidden = w1.shape[1]
    num_classes = w2.shape[1]

    tile, n_pad = _plan(n)
    assert a_q.shape == (n_pad, n_pad) and dinv.shape == (n_pad, 1)

    f_pad = _round_up(f_in, LANE)
    h_pad = _round_up(hidden, LANE)
    c_pad = _round_up(num_classes, LANE)

    x_p = _pad2(x, n_pad, f_pad).astype(jnp.bfloat16)
    w1_p = _pad2(w1, f_pad, h_pad).astype(jnp.bfloat16)
    b1_p = _pad2(b1.reshape(1, -1), 1, h_pad).astype(jnp.float32)
    w2_p = _pad2(w2, h_pad, c_pad).astype(jnp.bfloat16)
    b2_p = _pad2(b2.reshape(1, -1), 1, c_pad).astype(jnp.float32)

    # conv1 + ReLU (dropout is identity in eval mode); bf16 output feeds layer 2.
    xw1 = project(x_p, w1_p, dinv, tile)
    h = aggregate(a_q, xw1, dinv, b1_p, tile,
                  activation="relu", num_valid=hidden, out_dtype=jnp.bfloat16)
    # conv2 + log_softmax(dim=1)
    xw2 = project(h, w2_p, dinv, tile)
    out = aggregate(a_q, xw2, dinv, b2_p, tile,
                    activation="log_softmax", num_valid=num_classes,
                    out_dtype=jnp.float32)
    return out[:n, :num_classes]


def reference_forward(x, counts, dinv, w1, b1, w2, b2):
    """Pure-JAX reference mirroring the kernel's factored bf16 compute path."""
    def layer(xin, w, b):
        x32 = xin.astype(jnp.bfloat16).astype(jnp.float32)
        w32 = w.astype(jnp.bfloat16).astype(jnp.float32)
        xw = (dinv[:, None] * (x32 @ w32)).astype(jnp.bfloat16).astype(jnp.float32)
        return dinv[:, None] * (counts @ xw) + b.reshape(1, -1)

    h = jnp.maximum(layer(x, w1, b1), 0.0).astype(jnp.bfloat16)
    logits = layer(h, w2, b2)
    return jax.nn.log_softmax(logits, axis=1)


# ---------------------------------- main ------------------------------------ #

if __name__ == "__main__":
    key = jax.random.PRNGKey(0)
    k_x, k_e, k_w1, k_w2 = jax.random.split(key, 4)

    num_nodes = 64          # stand-in for Reddit's node count
    num_features = 32       # stand-in for dataset.num_node_features
    hidden = 16             # GCNConv(num_node_features, 16)
    num_classes = 8         # stand-in for dataset.num_classes
    num_edges = 256

    x = jax.random.normal(k_x, (num_nodes, num_features), jnp.float32)
    edge_index = jax.random.randint(k_e, (2, num_edges), 0, num_nodes, jnp.int32)

    # GCNConv params: weight [in, out] (glorot), bias [out] (zeros).
    w1 = glorot(k_w1, (num_features, hidden))
    b1 = jnp.zeros((hidden,), jnp.float32)
    w2 = glorot(k_w2, (hidden, num_classes))
    b2 = jnp.zeros((num_classes,), jnp.float32)

    # Built once in kernel dtype, pre-padded, reused across layers / calls.
    a_q, dinv_p = build_graph_operands(edge_index, num_nodes)

    out = gcn_forward(x, a_q, dinv_p, w1, b1, w2, b2)
    out = jax.block_until_ready(out)

    assert out.shape == (num_nodes, num_classes)
    # log_softmax rows must sum to 1 in prob space.
    assert jnp.allclose(jnp.sum(jnp.exp(out), axis=1), 1.0, atol=1e-3)
    # Match the pure-JAX reference (same factored bf16 compute path).
    counts = a_q[:num_nodes, :num_nodes].astype(jnp.float32)
    dinv_vec = dinv_p[:num_nodes, 0]
    ref = reference_forward(x, counts, dinv_vec, w1, b1, w2, b2)
    assert jnp.allclose(out, ref, atol=1e-2, rtol=1e-2)

    print("KERNEL_OK")
</pallas_src>

<mosaic_0001>
module attributes {stable_mosaic.version = 11 : i64} {
  func.func @aggregate_kernel(%arg0: i32, %arg1: i32, %arg2: memref<128x128xi8, #tpu.memory_space<vmem>>, %arg3: memref<128x128xbf16, #tpu.memory_space<vmem>>, %arg4: memref<128x1xf32, #tpu.memory_space<vmem>>, %arg5: memref<1x128xf32, #tpu.memory_space<vmem>>, %arg6: memref<128x128xbf16, #tpu.memory_space<vmem>>, %arg7: memref<128x128xf32, #tpu.memory_space<vmem>>) attributes {dimension_semantics = [#tpu.dimension_semantics<parallel>, #tpu.dimension_semantics<arbitrary>], iteration_bounds = array<i64: 1, 1>, scalar_prefetch = 0 : i64, scratch_operands = 1 : i64, tpu.core_type = #tpu.core_type<tc>, window_params = [{transform_indices = @transform_0, window_bounds = array<i64: 128, 128>}, {transform_indices = @transform_1, window_bounds = array<i64: 128, 128>}, {transform_indices = @transform_2, window_bounds = array<i64: 128, 1>}, {pipeline_mode = #tpu.pipeline_mode<synchronous>, transform_indices = @transform_3, window_bounds = array<i64: 1, 128>}, {transform_indices = @transform_4, window_bounds = array<i64: 128, 128>}]} {
    %c0_i32 = arith.constant 0 : i32
    %0 = arith.cmpi eq, %arg1, %c0_i32 : i32
    %1 = arith.extui %0 : i1 to i32
    %c0_i32_0 = arith.constant 0 : i32
    %2 = arith.cmpi ne, %1, %c0_i32_0 : i32
    scf.if %2 {
      %cst_10 = arith.constant 0.000000e+00 : f32
      %14 = vector.broadcast %cst_10 : f32 to vector<128x128xf32>
      %c0_11 = arith.constant 0 : index
      %c0_12 = arith.constant 0 : index
      %15 = vector.load %arg7[%c0_11, %c0_12] : memref<128x128xf32, #tpu.memory_space<vmem>>, vector<128x128xf32>
      tpu.vector_store %arg7[%c0_11, %c0_12], %14 {strides = array<i32>} : memref<128x128xf32, #tpu.memory_space<vmem>>, vector<128x128xf32>,
    } else {
    }
    %c0 = arith.constant 0 : index
    %c0_1 = arith.constant 0 : index
    %3 = vector.load %arg2[%c0, %c0_1] : memref<128x128xi8, #tpu.memory_space<vmem>>, vector<128x128xi8>
    %4 = arith.sitofp %3 : vector<128x128xi8> to vector<128x128xf32>
    %5 = arith.truncf %4 : vector<128x128xf32> to vector<128x128xbf16>
    %c0_2 = arith.constant 0 : index
    %c0_3 = arith.constant 0 : index
    %6 = vector.load %arg7[%c0_2, %c0_3] : memref<128x128xf32, #tpu.memory_space<vmem>>, vector<128x128xf32>
    %c0_4 = arith.constant 0 : index
    %c0_5 = arith.constant 0 : index
    %7 = vector.load %arg3[%c0_4, %c0_5] : memref<128x128xbf16, #tpu.memory_space<vmem>>, vector<128x128xbf16>
    %cst = arith.constant dense<0.000000e+00> : vector<128x128xf32>
    %8 = tpu.matmul %5, %7, %cst {dimension_numbers = #tpu.dot_dimension_numbers<[1], [0], [0], [1], [0, 0, 1, 1], [], []>} : vector<128x128xbf16>, vector<128x128xbf16>, vector<128x128xf32> -> vector<128x128xf32>
    %9 = arith.addf %6, %8 : vector<128x128xf32>
    %c0_6 = arith.constant 0 : index
    %c0_7 = arith.constant 0 : index
    %10 = vector.load %arg7[%c0_6, %c0_7] : memref<128x128xf32, #tpu.memory_space<vmem>>, vector<128x128xf32>
    tpu.vector_store %arg7[%c0_6, %c0_7], %9 {strides = array<i32>} : memref<128x128xf32, #tpu.memory_space<vmem>>, vector<128x128xf32>,
    %c0_i32_8 = arith.constant 0 : i32
    %11 = arith.cmpi eq, %arg1, %c0_i32_8 : i32
    %12 = arith.extui %11 : i1 to i32
    %c0_i32_9 = arith.constant 0 : i32
    %13 = arith.cmpi ne, %12, %c0_i32_9 : i32
    scf.if %13 {
      %c0_10 = arith.constant 0 : index
      %c0_11 = arith.constant 0 : index
      %14 = vector.load %arg7[%c0_10, %c0_11] : memref<128x128xf32, #tpu.memory_space<vmem>>, vector<128x128xf32>
      %c0_12 = arith.constant 0 : index
      %c0_13 = arith.constant 0 : index
      %15 = vector.load %arg4[%c0_12, %c0_13] : memref<128x1xf32, #tpu.memory_space<vmem>>, vector<128x1xf32>
      %16 = vector.broadcast %15 : vector<128x1xf32> to vector<128x128xf32>
      %17 = arith.mulf %14, %16 : vector<128x128xf32>
      %c0_14 = arith.constant 0 : index
      %c0_15 = arith.constant 0 : index
      %18 = vector.load %arg5[%c0_14, %c0_15] : memref<1x128xf32, #tpu.memory_space<vmem>>, vector<1x128xf32>
      %19 = vector.broadcast %18 : vector<1x128xf32> to vector<128x128xf32>
      %20 = arith.addf %17, %19 : vector<128x128xf32>
      %cst_16 = arith.constant 0.000000e+00 : f32
      %21 = vector.broadcast %cst_16 : f32 to vector<128x128xf32>
      %22 = arith.maximumf %20, %21 : vector<128x128xf32>
      %23 = arith.truncf %22 : vector<128x128xf32> to vector<128x128xbf16>
      %c0_17 = arith.constant 0 : index
      %c0_18 = arith.constant 0 : index
      %24 = vector.load %arg6[%c0_17, %c0_18] : memref<128x128xbf16, #tpu.memory_space<vmem>>, vector<128x128xbf16>
      tpu.vector_store %arg6[%c0_17, %c0_18], %23 {strides = array<i32>} : memref<128x128xbf16, #tpu.memory_space<vmem>>, vector<128x128xbf16>,
    } else {
    }
    return
  }
  func.func @transform_0(%arg0: i32, %arg1: i32) -> (i32, i32) {
    %c0_i32 = arith.constant 0 : i32
    return %arg0, %arg1 : i32, i32
  }
  func.func @transform_1(%arg0: i32, %arg1: i32) -> (i32, i32) {
    %c0_i32 = arith.constant 0 : i32
    %c0_i32_0 = arith.constant 0 : i32
    return %arg1, %c0_i32 : i32, i32
  }
  func.func @transform_2(%arg0: i32, %arg1: i32) -> (i32, i32) {
    %c0_i32 = arith.constant 0 : i32
    %c0_i32_0 = arith.constant 0 : i32
    return %arg0, %c0_i32 : i32, i32
  }
  func.func @transform_3(%arg0: i32, %arg1: i32) -> (i32, i32) {
    %c0_i32 = arith.constant 0 : i32
    %c0_i32_0 = arith.constant 0 : i32
    %c0_i32_1 = arith.constant 0 : i32
    return %c0_i32, %c0_i32_0 : i32, i32
  }
  func.func @transform_4(%arg0: i32, %arg1: i32) -> (i32, i32) {
    %c0_i32 = arith.constant 0 : i32
    %c0_i32_0 = arith.constant 0 : i32
    return %arg0, %c0_i32 : i32, i32
  }
}

module attributes {stable_mosaic.version = 11 : i64} {
  func.func @project_kernel(%arg0: i32, %arg1: memref<128x128xbf16, #tpu.memory_space<vmem>>, %arg2: memref<128x128xbf16, #tpu.memory_space<vmem>>, %arg3: memref<128x1xf32, #tpu.memory_space<vmem>>, %arg4: memref<128x128xbf16, #tpu.memory_space<vmem>>) attributes {dimension_semantics = [#tpu.dimension_semantics<parallel>], iteration_bounds = array<i64: 1>, scalar_prefetch = 0 : i64, scratch_operands = 0 : i64, tpu.core_type = #tpu.core_type<tc>, window_params = [{transform_indices = @transform_0, window_bounds = array<i64: 128, 128>}, {pipeline_mode = #tpu.pipeline_mode<synchronous>, transform_indices = @transform_1, window_bounds = array<i64: 128, 128>}, {transform_indices = @transform_2, window_bounds = array<i64: 128, 1>}, {transform_indices = @transform_3, window_bounds = array<i64: 128, 128>}]} {
    %c0 = arith.constant 0 : index
    %c0_0 = arith.constant 0 : index
    %0 = vector.load %arg1[%c0, %c0_0] : memref<128x128xbf16, #tpu.memory_space<vmem>>, vector<128x128xbf16>
    %c0_1 = arith.constant 0 : index
    %c0_2 = arith.constant 0 : index
    %1 = vector.load %arg2[%c0_1, %c0_2] : memref<128x128xbf16, #tpu.memory_space<vmem>>, vector<128x128xbf16>
    %cst = arith.constant dense<0.000000e+00> : vector<128x128xf32>
    %2 = tpu.matmul %0, %1, %cst {dimension_numbers = #tpu.dot_dimension_numbers<[1], [0], [0], [1], [0, 0, 1, 1], [], []>} : vector<128x128xbf16>, vector<128x128xbf16>, vector<128x128xf32> -> vector<128x128xf32>
    %c0_3 = arith.constant 0 : index
    %c0_4 = arith.constant 0 : index
    %3 = vector.load %arg3[%c0_3, %c0_4] : memref<128x1xf32, #tpu.memory_space<vmem>>, vector<128x1xf32>
    %4 = vector.broadcast %3 : vector<128x1xf32> to vector<128x128xf32>
    %5 = arith.mulf %2, %4 : vector<128x128xf32>
    %6 = arith.truncf %5 : vector<128x128xf32> to vector<128x128xbf16>
    %c0_5 = arith.constant 0 : index
    %c0_6 = arith.constant 0 : index
    %7 = vector.load %arg4[%c0_5, %c0_6] : memref<128x128xbf16, #tpu.memory_space<vmem>>, vector<128x128xbf16>
    tpu.vector_store %arg4[%c0_5, %c0_6], %6 {strides = array<i32>} : memref<128x128xbf16, #tpu.memory_space<vmem>>, vector<128x128xbf16>,
    return
  }
  func.func @transform_0(%arg0: i32) -> (i32, i32) {
    %c0_i32 = arith.constant 0 : i32
    %c0_i32_0 = arith.constant 0 : i32
    return %arg0, %c0_i32 : i32, i32
  }
  func.func @transform_1(%arg0: i32) -> (i32, i32) {
    %c0_i32 = arith.constant 0 : i32
    %c0_i32_0 = arith.constant 0 : i32
    %c0_i32_1 = arith.constant 0 : i32
    return %c0_i32, %c0_i32_0 : i32, i32
  }
  func.func @transform_2(%arg0: i32) -> (i32, i32) {
    %c0_i32 = arith.constant 0 : i32
    %c0_i32_0 = arith.constant 0 : i32
    return %arg0, %c0_i32 : i32, i32
  }
  func.func @transform_3(%arg0: i32) -> (i32, i32) {
    %c0_i32 = arith.constant 0 : i32
    %c0_i32_0 = arith.constant 0 : i32
    return %arg0, %c0_i32 : i32, i32
  }
}

module attributes {stable_mosaic.version = 11 : i64} {
  func.func @aggregate_kernel(%arg0: i32, %arg1: i32, %arg2: memref<128x128xi8, #tpu.memory_space<vmem>>, %arg3: memref<128x128xbf16, #tpu.memory_space<vmem>>, %arg4: memref<128x1xf32, #tpu.memory_space<vmem>>, %arg5: memref<1x128xf32, #tpu.memory_space<vmem>>, %arg6: memref<128x128xf32, #tpu.memory_space<vmem>>, %arg7: memref<128x128xf32, #tpu.memory_space<vmem>>) attributes {dimension_semantics = [#tpu.dimension_semantics<parallel>, #tpu.dimension_semantics<arbitrary>], iteration_bounds = array<i64: 1, 1>, scalar_prefetch = 0 : i64, scratch_operands = 1 : i64, tpu.core_type = #tpu.core_type<tc>, window_params = [{transform_indices = @transform_0, window_bounds = array<i64: 128, 128>}, {transform_indices = @transform_1, window_bounds = array<i64: 128, 128>}, {transform_indices = @transform_2, window_bounds = array<i64: 128, 1>}, {pipeline_mode = #tpu.pipeline_mode<synchronous>, transform_indices = @transform_3, window_bounds = array<i64: 1, 128>}, {transform_indices = @transform_4, window_bounds = array<i64: 128, 128>}]} {
    %c0_i32 = arith.constant 0 : i32
    %0 = arith.cmpi eq, %arg1, %c0_i32 : i32
    %1 = arith.extui %0 : i1 to i32
    %c0_i32_0 = arith.constant 0 : i32
    %2 = arith.cmpi ne, %1, %c0_i32_0 : i32
    scf.if %2 {
      %cst_10 = arith.constant 0.000000e+00 : f32
      %14 = vector.broadcast %cst_10 : f32 to vector<128x128xf32>
      %c0_11 = arith.constant 0 : index
      %c0_12 = arith.constant 0 : index
      %15 = vector.load %arg7[%c0_11, %c0_12] : memref<128x128xf32, #tpu.memory_space<vmem>>, vector<128x128xf32>
      tpu.vector_store %arg7[%c0_11, %c0_12], %14 {strides = array<i32>} : memref<128x128xf32, #tpu.memory_space<vmem>>, vector<128x128xf32>,
    } else {
    }
    %c0 = arith.constant 0 : index
    %c0_1 = arith.constant 0 : index
    %3 = vector.load %arg2[%c0, %c0_1] : memref<128x128xi8, #tpu.memory_space<vmem>>, vector<128x128xi8>
    %4 = arith.sitofp %3 : vector<128x128xi8> to vector<128x128xf32>
    %5 = arith.truncf %4 : vector<128x128xf32> to vector<128x128xbf16>
    %c0_2 = arith.constant 0 : index
    %c0_3 = arith.constant 0 : index
    %6 = vector.load %arg7[%c0_2, %c0_3] : memref<128x128xf32, #tpu.memory_space<vmem>>, vector<128x128xf32>
    %c0_4 = arith.constant 0 : index
    %c0_5 = arith.constant 0 : index
    %7 = vector.load %arg3[%c0_4, %c0_5] : memref<128x128xbf16, #tpu.memory_space<vmem>>, vector<128x128xbf16>
    %cst = arith.constant dense<0.000000e+00> : vector<128x128xf32>
    %8 = tpu.matmul %5, %7, %cst {dimension_numbers = #tpu.dot_dimension_numbers<[1], [0], [0], [1], [0, 0, 1, 1], [], []>} : vector<128x128xbf16>, vector<128x128xbf16>, vector<128x128xf32> -> vector<128x128xf32>
    %9 = arith.addf %6, %8 : vector<128x128xf32>
    %c0_6 = arith.constant 0 : index
    %c0_7 = arith.constant 0 : index
    %10 = vector.load %arg7[%c0_6, %c0_7] : memref<128x128xf32, #tpu.memory_space<vmem>>, vector<128x128xf32>
    tpu.vector_store %arg7[%c0_6, %c0_7], %9 {strides = array<i32>} : memref<128x128xf32, #tpu.memory_space<vmem>>, vector<128x128xf32>,
    %c0_i32_8 = arith.constant 0 : i32
    %11 = arith.cmpi eq, %arg1, %c0_i32_8 : i32
    %12 = arith.extui %11 : i1 to i32
    %c0_i32_9 = arith.constant 0 : i32
    %13 = arith.cmpi ne, %12, %c0_i32_9 : i32
    scf.if %13 {
      %c0_10 = arith.constant 0 : index
      %c0_11 = arith.constant 0 : index
      %14 = vector.load %arg7[%c0_10, %c0_11] : memref<128x128xf32, #tpu.memory_space<vmem>>, vector<128x128xf32>
      %c0_12 = arith.constant 0 : index
      %c0_13 = arith.constant 0 : index
      %15 = vector.load %arg4[%c0_12, %c0_13] : memref<128x1xf32, #tpu.memory_space<vmem>>, vector<128x1xf32>
      %16 = vector.broadcast %15 : vector<128x1xf32> to vector<128x128xf32>
      %17 = arith.mulf %14, %16 : vector<128x128xf32>
      %c0_14 = arith.constant 0 : index
      %c0_15 = arith.constant 0 : index
      %18 = vector.load %arg5[%c0_14, %c0_15] : memref<1x128xf32, #tpu.memory_space<vmem>>, vector<1x128xf32>
      %19 = vector.broadcast %18 : vector<1x128xf32> to vector<128x128xf32>
      %20 = arith.addf %17, %19 : vector<128x128xf32>
      %21 = tpu.iota {dimensions = array<i32: 1>} : vector<128x128xi32>
      %c8_i32 = arith.constant 8 : i32
      %22 = vector.broadcast %c8_i32 : i32 to vector<128x128xi32>
      %23 = arith.cmpi slt, %21, %22 : vector<128x128xi32>
      %cst_16 = arith.constant 0xFF800000 : f32
      %24 = vector.broadcast %cst_16 : f32 to vector<128x128xf32>
      %25 = arith.select %23, %20, %24 : vector<128x128xi1>, vector<128x128xf32>
      %cst_17 = arith.constant dense<0xFF800000> : vector<128xf32>
      %26 = vector.multi_reduction <maximumf>, %25, %cst_17 [1] : vector<128x128xf32> to vector<128xf32>
      %27 = vector.shape_cast %26 : vector<128xf32> to vector<128x1xf32>
      %28 = vector.broadcast %27 : vector<128x1xf32> to vector<128x128xf32>
      %29 = arith.subf %25, %28 : vector<128x128xf32>
      %30 = math.exp %29 : vector<128x128xf32>
      %cst_18 = arith.constant dense<0.000000e+00> : vector<128xf32>
      %31 = vector.multi_reduction <add>, %30, %cst_18 [1] : vector<128x128xf32> to vector<128xf32>
      %32 = vector.shape_cast %31 : vector<128xf32> to vector<128x1xf32>
      %33 = math.log %32 : vector<128x1xf32>
      %34 = arith.addf %33, %27 : vector<128x1xf32>
      %35 = vector.broadcast %34 : vector<128x1xf32> to vector<128x128xf32>
      %36 = arith.subf %25, %35 : vector<128x128xf32>
      %c0_19 = arith.constant 0 : index
      %c0_20 = arith.constant 0 : index
      %37 = vector.load %arg6[%c0_19, %c0_20] : memref<128x128xf32, #tpu.memory_space<vmem>>, vector<128x128xf32>
      tpu.vector_store %arg6[%c0_19, %c0_20], %36 {strides = array<i32>} : memref<128x128xf32, #tpu.memory_space<vmem>>, vector<128x128xf32>,
    } else {
    }
    return
  }
  func.func @transform_0(%arg0: i32, %arg1: i32) -> (i32, i32) {
    %c0_i32 = arith.constant 0 : i32
    return %arg0, %arg1 : i32, i32
  }
  func.func @transform_1(%arg0: i32, %arg1: i32) -> (i32, i32) {
    %c0_i32 = arith.constant 0 : i32
    %c0_i32_0 = arith.constant 0 : i32
    return %arg1, %c0_i32 : i32, i32
  }
  func.func @transform_2(%arg0: i32, %arg1: i32) -> (i32, i32) {
    %c0_i32 = arith.constant 0 : i32
    %c0_i32_0 = arith.constant 0 : i32
    return %arg0, %c0_i32 : i32, i32
  }
  func.func @transform_3(%arg0: i32, %arg1: i32) -> (i32, i32) {
    %c0_i32 = arith.constant 0 : i32
    %c0_i32_0 = arith.constant 0 : i32
    %c0_i32_1 = arith.constant 0 : i32
    return %c0_i32, %c0_i32_0 : i32, i32
  }
  func.func @transform_4(%arg0: i32, %arg1: i32) -> (i32, i32) {
    %c0_i32 = arith.constant 0 : i32
    %c0_i32_0 = arith.constant 0 : i32
    return %arg0, %c0_i32 : i32, i32
  }
}

</mosaic_0001>

<llo_original>
// kernel: gcn_forward.4
$region0: #{gcn_forward.4}
  #allocation0 [shape = 'u32[]', space=smem, size = 0x4, offset = 0x4, fixed_abs, tag = 'smem constant byte address 0x4 - core index']
  #allocation1 [shape = 'u32[144,128]{1,0:T(1,128)}', space=vmem, size = 0x12000, scoped, tag = 'internal scratch']
  %s0 = inlined_call_operand.vmem [shape: bf16[128,128], index: 0, kind: input, shape index: {}]
  %s1 = inlined_call_operand.vmem [shape: bf16[128,128], index: 1, kind: input, shape index: {}]
  %s2 = inlined_call_operand.vmem [shape: f32[128,1], index: 2, kind: input, shape index: {}]
  %s3 = inlined_call_operand.vmem [shape: bf16[128,128], index: 3, kind: output, shape index: {}]
  %s4 = sld [smem:[#allocation0]]
  $region22: #{gcn_forward.4} parent=0
    _
  %s6 = ssub.s32 1, %s4
  %s7 = scalar_select 0, %s6, %s4
  // Predicated region
  $region2: #{gcn_forward.4} parent=0 // pred_check
    _
  $region3: #{gcn_forward.4} parent=0 // pred_check_branch
    %9 = sbr.rel (0) target = $region5
  $region4: #{gcn_forward.4} parent=0 // pred_region
    _
  $region5: #{gcn_forward.4} parent=0 // pred_fallthru
    _
  // Predicated region
  $region6: #{gcn_forward.4} parent=0 // pred_check
    _
  $region7: #{gcn_forward.4} parent=0 // pred_check_branch
    %11 = sbr.rel (0) target = $region9
  $region8: #{gcn_forward.4} parent=0 // pred_region
    _
  $region9: #{gcn_forward.4} parent=0 // pred_fallthru
    _
  // Predicated region
  $region10: #{gcn_forward.4} parent=0 // pred_check
    _
  $region11: #{gcn_forward.4} parent=0 // pred_check_branch
    %13 = sbr.rel (0) target = $region13
  $region12: #{gcn_forward.4} parent=0 // pred_region
    _
  $region13: #{gcn_forward.4} parent=0 // pred_fallthru
    _
  %v15 = vld [vmem:[%s0] sm:$0xf]
  %v16 = vld [vmem:[%s0 + $0x4] sm:$0xf]
  %v17 = vld [vmem:[%s0 + $0x8] sm:$0xf]
  %v18 = vld [vmem:[%s0 + $0xc] sm:$0xf]
  %v19 = vld [vmem:[%s0 + $0x10] sm:$0xf]
  %v20 = vld [vmem:[%s0 + $0x14] sm:$0xf]
  %v21 = vld [vmem:[%s0 + $0x18] sm:$0xf]
  %v22 = vld [vmem:[%s0 + $0x1c] sm:$0xf]
  %v23 = vld [vmem:[%s0 + $0x20] sm:$0xf]
  %v24 = vld [vmem:[%s0 + $0x24] sm:$0xf]
  %v25 = vld [vmem:[%s0 + $0x28] sm:$0xf]
  %v26 = vld [vmem:[%s0 + $0x2c] sm:$0xf]
  %v27 = vld [vmem:[%s0 + $0x30] sm:$0xf]
  %v28 = vld [vmem:[%s0 + $0x34] sm:$0xf]
  %v29 = vld [vmem:[%s0 + $0x38] sm:$0xf]
  %v30 = vld [vmem:[%s0 + $0x3c] sm:$0xf]
  %v31 = vld [vmem:[%s1] sm:$0xf]
  %v32 = vld [vmem:[%s1 + $0x4] sm:$0xf]
  %v33 = vld [vmem:[%s1 + $0x8] sm:$0xf]
  %v34 = vld [vmem:[%s1 + $0xc] sm:$0xf]
  %v35 = vld [vmem:[%s1 + $0x10] sm:$0xf]
  %v36 = vld [vmem:[%s1 + $0x14] sm:$0xf]
  %v37 = vld [vmem:[%s1 + $0x18] sm:$0xf]
  %v38 = vld [vmem:[%s1 + $0x1c] sm:$0xf]
  %v39 = vld [vmem:[%s1 + $0x20] sm:$0xf]
  %v40 = vld [vmem:[%s1 + $0x24] sm:$0xf]
  %v41 = vld [vmem:[%s1 + $0x28] sm:$0xf]
  %v42 = vld [vmem:[%s1 + $0x2c] sm:$0xf]
  %v43 = vld [vmem:[%s1 + $0x30] sm:$0xf]
  %v44 = vld [vmem:[%s1 + $0x34] sm:$0xf]
  %v45 = vld [vmem:[%s1 + $0x38] sm:$0xf]
  %v46 = vld [vmem:[%s1 + $0x3c] sm:$0xf]
  %v63 = vunpack.c.l.b16 %v15
  %v64 = vunpack.c.l.b16 %v16
  %v65 = vunpack.c.l.b16 %v17
  %v66 = vunpack.c.l.b16 %v18
  %v67 = vunpack.c.l.b16 %v19
  %v68 = vunpack.c.l.b16 %v20
  %v69 = vunpack.c.l.b16 %v21
  %v70 = vunpack.c.l.b16 %v22
  %v71 = vunpack.c.l.b16 %v23
  %v72 = vunpack.c.l.b16 %v24
  %v73 = vunpack.c.l.b16 %v25
  %v74 = vunpack.c.l.b16 %v26
  %v75 = vunpack.c.l.b16 %v27
  %v76 = vunpack.c.l.b16 %v28
  %v77 = vunpack.c.l.b16 %v29
  %v78 = vunpack.c.l.b16 %v30
  %v79 = vpack.c.b16 %v64, %v63
  %v80 = vpack.c.b16 %v66, %v65
  %v81 = vpack.c.b16 %v68, %v67
  %v82 = vpack.c.b16 %v70, %v69
  %v83 = vpack.c.b16 %v72, %v71
  %v84 = vpack.c.b16 %v74, %v73
  %v85 = vpack.c.b16 %v76, %v75
  %v86 = vpack.c.b16 %v78, %v77
  %v111 = vunpack.c.l.b16 %v31
  %v112 = vunpack.c.l.b16 %v32
  %v113 = vunpack.c.l.b16 %v33
  %v114 = vunpack.c.l.b16 %v34
  %v115 = vunpack.c.l.b16 %v35
  %v116 = vunpack.c.l.b16 %v36
  %v117 = vunpack.c.l.b16 %v37
  %v118 = vunpack.c.l.b16 %v38
  %v119 = vunpack.c.l.b16 %v39
  %v120 = vunpack.c.l.b16 %v40
  %v121 = vunpack.c.l.b16 %v41
  %v122 = vunpack.c.l.b16 %v42
  %v123 = vunpack.c.l.b16 %v43
  %v124 = vunpack.c.l.b16 %v44
  %v125 = vunpack.c.l.b16 %v45
  %v126 = vunpack.c.l.b16 %v46
  %v127 = vpack.c.b16 %v112, %v111
  %v128 = vpack.c.b16 %v114, %v113
  %v129 = vpack.c.b16 %v116, %v115
  %v130 = vpack.c.b16 %v118, %v117
  %v131 = vpack.c.b16 %v120, %v119
  %v132 = vpack.c.b16 %v122, %v121
  %v133 = vpack.c.b16 %v124, %v123
  %v134 = vpack.c.b16 %v126, %v125
  %143 = vmatprep.subr.bf16.mxu0 0
  %144 = vmatpush1.bf16.msra.mxu0 %v127
  %145 = vmatprep.subr.bf16.mxu0 0
  %146 = vmatpush1.bf16.msra.mxu0 %v128
  %147 = vmatprep.subr.bf16.mxu0 0
  %148 = vmatpush1.bf16.msra.mxu0 %v129
  %149 = vmatprep.subr.bf16.mxu0 0
  %150 = vmatpush1.bf16.msra.mxu0 %v130
  %151 = vmatprep.subr.bf16.mxu0 0
  %152 = vmatpush1.bf16.msra.mxu0 %v131
  %153 = vmatprep.subr.bf16.mxu0 0
  %154 = vmatpush1.bf16.msra.mxu0 %v132
  %155 = vmatprep.subr.bf16.mxu0 0
  %156 = vmatpush1.bf16.msra.mxu0 %v133
  %157 = vmatprep.subr.bf16.mxu0 0
  %158 = vmatpush1.bf16.msra.mxu0 %v134
  %159 = vmatprep.subr.bf16.mxu0 0
  %160 = vmatpush1.bf16.msra.mxu0 0
  %161 = vmatprep.subr.bf16.mxu0 0
  %162 = vmatpush1.bf16.msra.mxu0 0
  %163 = vmatprep.subr.bf16.mxu0 0
  %164 = vmatpush1.bf16.msra.mxu0 0
  %165 = vmatprep.subr.bf16.mxu0 0
  %166 = vmatpush1.bf16.msra.mxu0 0
  %167 = vmatprep.subr.bf16.mxu0 0
  %168 = vmatpush1.bf16.msra.mxu0 0
  %169 = vmatprep.subr.bf16.mxu0 0
  %170 = vmatpush1.bf16.msra.mxu0 0
  %171 = vmatprep.subr.bf16.mxu0 0
  %172 = vmatpush1.bf16.msra.mxu0 0
  %173 = vmatprep.subr.bf16.mxu0 0
  %174 = vmatpush1.bf16.msra.mxu0 0
  %175 = vmatprep.mubr.bf16.mxu0 0
  %176 = vmatmul.mubr.bf16.gmra.mrb[0].mxu0 %v79
  %v177 = vpop.f32.mrb[0].mxu0
  %v178 = vadd.f32 0.0, %v177
  %v179 = vpop.f32.mrb[0].mxu0
  %v180 = vpop.f32.mrb[0].mxu0
  %v181 = vadd.f32 0.0, %v180
  %v182 = vpop.f32.mrb[0].mxu0
  %183 = vmatprep.mubr.bf16.mxu0 0
  %184 = vmatmul.mubr.bf16.gmra.mrb[0].mxu0 %v80
  %v185 = vpop.f32.mrb[0].mxu0
  %v186 = vadd.f32 0.0, %v185
  %v187 = vpop.f32.mrb[0].mxu0
  %v188 = vpop.f32.mrb[0].mxu0
  %v189 = vadd.f32 0.0, %v188
  %v190 = vpop.f32.mrb[0].mxu0
  %191 = vmatprep.mubr.bf16.mxu0 0
  %192 = vmatmul.mubr.bf16.gmra.mrb[0].mxu0 %v81
  %v193 = vpop.f32.mrb[0].mxu0
  %v194 = vadd.f32 0.0, %v193
  %v195 = vpop.f32.mrb[0].mxu0
  %v196 = vpop.f32.mrb[0].mxu0
  %v197 = vadd.f32 0.0, %v196
  %v198 = vpop.f32.mrb[0].mxu0
  %199 = vmatprep.mubr.bf16.mxu0 0
  %200 = vmatmul.mubr.bf16.gmra.mrb[0].mxu0 %v82
  %v201 = vpop.f32.mrb[0].mxu0
  %v202 = vadd.f32 0.0, %v201
  %v203 = vpop.f32.mrb[0].mxu0
  %v204 = vpop.f32.mrb[0].mxu0
  %v205 = vadd.f32 0.0, %v204
  %v206 = vpop.f32.mrb[0].mxu0
  %207 = vmatprep.mubr.bf16.mxu0 0
  %208 = vmatmul.mubr.bf16.gmra.mrb[0].mxu0 %v83
  %v209 = vpop.f32.mrb[0].mxu0
  %v210 = vadd.f32 0.0, %v209
  %v211 = vpop.f32.mrb[0].mxu0
  %v212 = vpop.f32.mrb[0].mxu0
  %v213 = vadd.f32 0.0, %v212
  %v214 = vpop.f32.mrb[0].mxu0
  %215 = vmatprep.mubr.bf16.mxu0 0
  %216 = vmatmul.mubr.bf16.gmra.mrb[0].mxu0 %v84
  %v217 = vpop.f32.mrb[0].mxu0
  %v218 = vadd.f32 0.0, %v217
  %v219 = vpop.f32.mrb[0].mxu0
  %v220 = vpop.f32.mrb[0].mxu0
  %v221 = vadd.f32 0.0, %v220
  %v222 = vpop.f32.mrb[0].mxu0
  %223 = vmatprep.mubr.bf16.mxu0 0
  %224 = vmatmul.mubr.bf16.gmra.mrb[0].mxu0 %v85
  %v225 = vpop.f32.mrb[0].mxu0
  %v226 = vadd.f32 0.0, %v225
  %v227 = vpop.f32.mrb[0].mxu0
  %v228 = vpop.f32.mrb[0].mxu0
  %v229 = vadd.f32 0.0, %v228
  %v230 = vpop.f32.mrb[0].mxu0
  %231 = vmatprep.mubr.bf16.mxu0 0
  %232 = vmatmul.mubr.bf16.gmra.mrb[0].mxu0 %v86
  %v233 = vpop.f32.mrb[0].mxu0
  %v234 = vadd.f32 0.0, %v233
  %v235 = vpop.f32.mrb[0].mxu0
  %v236 = vpop.f32.mrb[0].mxu0
  %v237 = vadd.f32 0.0, %v236
  %v238 = vpop.f32.mrb[0].mxu0
  %239 = vdwg.mxu0
  %v240 = vld [vmem:[%s2] sm:$0xff]
  %v241 = vld [vmem:[%s2 + $0x8] sm:$0xff]
  %v242 = vld [vmem:[%s2 + $0x10] sm:$0xff]
  %v243 = vld [vmem:[%s2 + $0x18] sm:$0xff]
  %v244 = vld [vmem:[%s2 + $0x20] sm:$0xff]
  %v245 = vld [vmem:[%s2 + $0x28] sm:$0xff]
  %v246 = vld [vmem:[%s2 + $0x30] sm:$0xff]
  %v247 = vld [vmem:[%s2 + $0x38] sm:$0xff]
  %v248 = vld [vmem:[%s2 + $0x40] sm:$0xff]
  %v249 = vld [vmem:[%s2 + $0x48] sm:$0xff]
  %v250 = vld [vmem:[%s2 + $0x50] sm:$0xff]
  %v251 = vld [vmem:[%s2 + $0x58] sm:$0xff]
  %v252 = vld [vmem:[%s2 + $0x60] sm:$0xff]
  %v253 = vld [vmem:[%s2 + $0x68] sm:$0xff]
  %v254 = vld [vmem:[%s2 + $0x70] sm:$0xff]
  %v255 = vld [vmem:[%s2 + $0x78] sm:$0xff]
  %257 = vset.pattern.permute.xlu0 0
  %258 = vperm.xlu0 %257, %v240
  %v259 = vpop.permute.xlu0 %258
  %262 = vset.pattern.permute.xlu0 0
  %263 = vperm.xlu0 %262, %v241
  %v264 = vpop.permute.xlu0 %263
  %267 = vset.pattern.permute.xlu0 0
  %268 = vperm.xlu0 %267, %v242
  %v269 = vpop.permute.xlu0 %268
  %272 = vset.pattern.permute.xlu0 0
  %273 = vperm.xlu0 %272, %v243
  %v274 = vpop.permute.xlu0 %273
  %277 = vset.pattern.permute.xlu0 0
  %278 = vperm.xlu0 %277, %v244
  %v279 = vpop.permute.xlu0 %278
  %282 = vset.pattern.permute.xlu0 0
  %283 = vperm.xlu0 %282, %v245
  %v284 = vpop.permute.xlu0 %283
  %287 = vset.pattern.permute.xlu0 0
  %288 = vperm.xlu0 %287, %v246
  %v289 = vpop.permute.xlu0 %288
  %292 = vset.pattern.permute.xlu0 0
  %293 = vperm.xlu0 %292, %v247
  %v294 = vpop.permute.xlu0 %293
  %297 = vset.pattern.permute.xlu0 0
  %298 = vperm.xlu0 %297, %v248
  %v299 = vpop.permute.xlu0 %298
  %302 = vset.pattern.permute.xlu0 0
  %303 = vperm.xlu0 %302, %v249
  %v304 = vpop.permute.xlu0 %303
  %307 = vset.pattern.permute.xlu0 0
  %308 = vperm.xlu0 %307, %v250
  %v309 = vpop.permute.xlu0 %308
  %312 = vset.pattern.permute.xlu0 0
  %313 = vperm.xlu0 %312, %v251
  %v314 = vpop.permute.xlu0 %313
  %317 = vset.pattern.permute.xlu0 0
  %318 = vperm.xlu0 %317, %v252
  %v319 = vpop.permute.xlu0 %318
  %322 = vset.pattern.permute.xlu0 0
  %323 = vperm.xlu0 %322, %v253
  %v324 = vpop.permute.xlu0 %323
  %327 = vset.pattern.permute.xlu0 0
  %328 = vperm.xlu0 %327, %v254
  %v329 = vpop.permute.xlu0 %328
  %332 = vset.pattern.permute.xlu0 0
  %333 = vperm.xlu0 %332, %v255
  %v334 = vpop.permute.xlu0 %333
  %v336 = vmul.f32 %v178, %v259
  %v337 = vmul.f32 %v181, %v264
  %v338 = vmul.f32 %v186, %v269
  %v339 = vmul.f32 %v189, %v274
  %v340 = vmul.f32 %v194, %v279
  %v341 = vmul.f32 %v197, %v284
  %v342 = vmul.f32 %v202, %v289
  %v343 = vmul.f32 %v205, %v294
  %v344 = vmul.f32 %v210, %v299
  %v345 = vmul.f32 %v213, %v304
  %v346 = vmul.f32 %v218, %v309
  %v347 = vmul.f32 %v221, %v314
  %v348 = vmul.f32 %v226, %v319
  %v349 = vmul.f32 %v229, %v324
  %v350 = vmul.f32 %v234, %v329
  %v351 = vmul.f32 %v237, %v334
  %v352 = vpack.c.bf16 %v337, %v336
  %v353 = vpack.c.bf16 %v339, %v338
  %v354 = vpack.c.bf16 %v341, %v340
  %v355 = vpack.c.bf16 %v343, %v342
  %v356 = vpack.c.bf16 %v345, %v344
  %v357 = vpack.c.bf16 %v347, %v346
  %v358 = vpack.c.bf16 %v349, %v348
  %v359 = vpack.c.bf16 %v351, %v350
  %v368 = vunpack.c.l.b16 %v352
  %v369 = vunpack.c.h.b16 %v352
  %v370 = vunpack.c.l.b16 %v353
  %v371 = vunpack.c.h.b16 %v353
  %v372 = vunpack.c.l.b16 %v354
  %v373 = vunpack.c.h.b16 %v354
  %v374 = vunpack.c.l.b16 %v355
  %v375 = vunpack.c.h.b16 %v355
  %v376 = vunpack.c.l.b16 %v356
  %v377 = vunpack.c.h.b16 %v356
  %v378 = vunpack.c.l.b16 %v357
  %v379 = vunpack.c.h.b16 %v357
  %v380 = vunpack.c.l.b16 %v358
  %v381 = vunpack.c.h.b16 %v358
  %v382 = vunpack.c.l.b16 %v359
  %v383 = vunpack.c.h.b16 %v359
  %v384 = vpack.c.b16 %v368, %v368
  %v385 = vpack.c.b16 %v369, %v369
  %v386 = vpack.c.b16 %v370, %v370
  %v387 = vpack.c.b16 %v371, %v371
  %v388 = vpack.c.b16 %v372, %v372
  %v389 = vpack.c.b16 %v373, %v373
  %v390 = vpack.c.b16 %v374, %v374
  %v391 = vpack.c.b16 %v375, %v375
  %v392 = vpack.c.b16 %v376, %v376
  %v393 = vpack.c.b16 %v377, %v377
  %v394 = vpack.c.b16 %v378, %v378
  %v395 = vpack.c.b16 %v379, %v379
  %v396 = vpack.c.b16 %v380, %v380
  %v397 = vpack.c.b16 %v381, %v381
  %v398 = vpack.c.b16 %v382, %v382
  %v399 = vpack.c.b16 %v383, %v383
  %416 = vst [vmem:[%s3] sm:$0xf] %v384
  %417 = vst [vmem:[%s3 + $0x4] sm:$0xf] %v385
  %418 = vst [vmem:[%s3 + $0x8] sm:$0xf] %v386
  %419 = vst [vmem:[%s3 + $0xc] sm:$0xf] %v387
  %420 = vst [vmem:[%s3 + $0x10] sm:$0xf] %v388
  %421 = vst [vmem:[%s3 + $0x14] sm:$0xf] %v389
  %422 = vst [vmem:[%s3 + $0x18] sm:$0xf] %v390
  %423 = vst [vmem:[%s3 + $0x1c] sm:$0xf] %v391
  %424 = vst [vmem:[%s3 + $0x20] sm:$0xf] %v392
  %425 = vst [vmem:[%s3 + $0x24] sm:$0xf] %v393
  %426 = vst [vmem:[%s3 + $0x28] sm:$0xf] %v394
  %427 = vst [vmem:[%s3 + $0x2c] sm:$0xf] %v395
  %428 = vst [vmem:[%s3 + $0x30] sm:$0xf] %v396
  %429 = vst [vmem:[%s3 + $0x34] sm:$0xf] %v397
  %430 = vst [vmem:[%s3 + $0x38] sm:$0xf] %v398
  %431 = vst [vmem:[%s3 + $0x3c] sm:$0xf] %v399
  // Predicated region
  $region14: #{gcn_forward.4} parent=0 // pred_check
    _
  $region15: #{gcn_forward.4} parent=0 // pred_check_branch
    %433 = sbr.rel (0) target = $region17
  $region16: #{gcn_forward.4} parent=0 // pred_region
    _
  $region17: #{gcn_forward.4} parent=0 // pred_fallthru
    _
  // Predicated region
  $region18: #{gcn_forward.4} parent=0 // pred_check
    _
  $region19: #{gcn_forward.4} parent=0 // pred_check_branch
    %435 = sbr.rel (0) target = $region21
  $region20: #{gcn_forward.4} parent=0 // pred_region
    _
  $region21: #{gcn_forward.4} parent=0 // pred_fallthru
    _

// kernel: gcn_forward.5
$region0: #{gcn_forward.5}
  #allocation0 [shape = 'u32[]', space=smem, size = 0x4, offset = 0x4, fixed_abs, tag = 'smem constant byte address 0x4 - core index']
  #allocation1 [shape = 'u32[144,128]{1,0:T(1,128)}', space=vmem, size = 0x12000, scoped, tag = 'internal scratch']
  #allocation2 [shape = 'f32[128,128]{1,0:T(8,128)}', space=vmem, size = 0x10000, scoped, tag = 'scratch operand']
  %s0 = inlined_call_operand.vmem [shape: s8[128,128], index: 0, kind: input, shape index: {}]
  %s1 = inlined_call_operand.vmem [shape: bf16[128,128], index: 1, kind: input, shape index: {}]
  %s2 = inlined_call_operand.vmem [shape: f32[128,1], index: 2, kind: input, shape index: {}]
  %s3 = inlined_call_operand.vmem [shape: f32[1,128], index: 3, kind: input, shape index: {}]
  %s4 = inlined_call_operand.vmem [shape: bf16[128,128], index: 4, kind: output, shape index: {}]
  %s5 = sld [smem:[#allocation0]]
  $region34: #{gcn_forward.5} parent=0
    _
  %s7 = ssub.s32 1, %s5
  %s8 = scalar_select 0, %s7, %s5
  // Predicated region
  $region2: #{gcn_forward.5} parent=0 // pred_check
    _
  $region3: #{gcn_forward.5} parent=0 // pred_check_branch
    %10 = sbr.rel (0) target = $region5
  $region4: #{gcn_forward.5} parent=0 // pred_region
    _
  $region5: #{gcn_forward.5} parent=0 // pred_fallthru
    _
  // Predicated region
  $region6: #{gcn_forward.5} parent=0 // pred_check
    _
  $region7: #{gcn_forward.5} parent=0 // pred_check_branch
    %12 = sbr.rel (0) target = $region9
  $region8: #{gcn_forward.5} parent=0 // pred_region
    _
  $region9: #{gcn_forward.5} parent=0 // pred_fallthru
    _
  // Predicated region
  $region10: #{gcn_forward.5} parent=0 // pred_check
    _
  $region11: #{gcn_forward.5} parent=0 // pred_check_branch
    %14 = sbr.rel (0) target = $region13
  $region12: #{gcn_forward.5} parent=0 // pred_region
    _
  $region13: #{gcn_forward.5} parent=0 // pred_fallthru
    _
  // Predicated region
  $region14: #{gcn_forward.5} parent=0 // pred_check
    _
  $region15: #{gcn_forward.5} parent=0 // pred_check_branch
    %16 = sbr.rel (0) target = $region17
  $region16: #{gcn_forward.5} parent=0 // pred_region
    _
  $region17: #{gcn_forward.5} parent=0 // pred_fallthru
    _
  %p18 = scmp.eq.s32.totalorder 0, 0
  // Predicated region
  $region18: #{gcn_forward.5} parent=0 // pred_check
    %p19 = pneg %p18
  $region19: #{gcn_forward.5} parent=0 // pred_check_branch
    %21 = sbr.rel (%p19) target = $region21
  $region20: #{gcn_forward.5} parent=0 // pred_region
    %22 = vst [vmem:[#allocation2] sm:$0xff] 0.0
    %23 = vst [vmem:[#allocation2 + $0x8] sm:$0xff] 0.0
    %24 = vst [vmem:[#allocation2 + $0x10] sm:$0xff] 0.0
    %25 = vst [vmem:[#allocation2 + $0x18] sm:$0xff] 0.0
    %26 = vst [vmem:[#allocation2 + $0x20] sm:$0xff] 0.0
    %27 = vst [vmem:[#allocation2 + $0x28] sm:$0xff] 0.0
    %28 = vst [vmem:[#allocation2 + $0x30] sm:$0xff] 0.0
    %29 = vst [vmem:[#allocation2 + $0x38] sm:$0xff] 0.0
    %30 = vst [vmem:[#allocation2 + $0x40] sm:$0xff] 0.0
    %31 = vst [vmem:[#allocation2 + $0x48] sm:$0xff] 0.0
    %32 = vst [vmem:[#allocation2 + $0x50] sm:$0xff] 0.0
    %33 = vst [vmem:[#allocation2 + $0x58] sm:$0xff] 0.0
    %34 = vst [vmem:[#allocation2 + $0x60] sm:$0xff] 0.0
    %35 = vst [vmem:[#allocation2 + $0x68] sm:$0xff] 0.0
    %36 = vst [vmem:[#allocation2 + $0x70] sm:$0xff] 0.0
    %37 = vst [vmem:[#allocation2 + $0x78] sm:$0xff] 0.0
  $region21: #{gcn_forward.5} parent=0 // pred_fallthru
    _
  %v38 = vld [vmem:[%s0] sm:$0xff]
  %v39 = vld [vmem:[%s0 + $0x8] sm:$0xff]
  %v40 = vld [vmem:[%s0 + $0x10] sm:$0xff]
  %v41 = vld [vmem:[%s0 + $0x18] sm:$0xff]
  %v42 = vunpack.c.l.s8.bf16 %v38
  %v43 = vunpack.c.h.s8.bf16 %v38
  %v44 = vunpack.c.l.s8.bf16 %v39
  %v45 = vunpack.c.h.s8.bf16 %v39
  %v46 = vunpack.c.l.s8.bf16 %v40
  %v47 = vunpack.c.h.s8.bf16 %v40
  %v48 = vunpack.c.l.s8.bf16 %v41
  %v49 = vunpack.c.h.s8.bf16 %v41
  %v50 = vld [vmem:[#allocation2] sm:$0xff]
  %v51 = vld [vmem:[#allocation2 + $0x8] sm:$0xff]
  %v52 = vld [vmem:[#allocation2 + $0x10] sm:$0xff]
  %v53 = vld [vmem:[#allocation2 + $0x18] sm:$0xff]
  %v54 = vld [vmem:[#allocation2 + $0x20] sm:$0xff]
  %v55 = vld [vmem:[#allocation2 + $0x28] sm:$0xff]
  %v56 = vld [vmem:[#allocation2 + $0x30] sm:$0xff]
  %v57 = vld [vmem:[#allocation2 + $0x38] sm:$0xff]
  %v58 = vld [vmem:[#allocation2 + $0x40] sm:$0xff]
  %v59 = vld [vmem:[#allocation2 + $0x48] sm:$0xff]
  %v60 = vld [vmem:[#allocation2 + $0x50] sm:$0xff]
  %v61 = vld [vmem:[#allocation2 + $0x58] sm:$0xff]
  %v62 = vld [vmem:[#allocation2 + $0x60] sm:$0xff]
  %v63 = vld [vmem:[#allocation2 + $0x68] sm:$0xff]
  %v64 = vld [vmem:[#allocation2 + $0x70] sm:$0xff]
  %v65 = vld [vmem:[#allocation2 + $0x78] sm:$0xff]
  %v66 = vld [vmem:[%s1] sm:$0xf]
  %v67 = vld [vmem:[%s1 + $0x4] sm:$0xf]
  %v68 = vld [vmem:[%s1 + $0x8] sm:$0xf]
  %v69 = vld [vmem:[%s1 + $0xc] sm:$0xf]
  %v70 = vld [vmem:[%s1 + $0x10] sm:$0xf]
  %v71 = vld [vmem:[%s1 + $0x14] sm:$0xf]
  %v72 = vld [vmem:[%s1 + $0x18] sm:$0xf]
  %v73 = vld [vmem:[%s1 + $0x1c] sm:$0xf]
  %v74 = vld [vmem:[%s1 + $0x20] sm:$0xf]
  %v75 = vld [vmem:[%s1 + $0x24] sm:$0xf]
  %v76 = vld [vmem:[%s1 + $0x28] sm:$0xf]
  %v77 = vld [vmem:[%s1 + $0x2c] sm:$0xf]
  %v78 = vld [vmem:[%s1 + $0x30] sm:$0xf]
  %v79 = vld [vmem:[%s1 + $0x34] sm:$0xf]
  %v80 = vld [vmem:[%s1 + $0x38] sm:$0xf]
  %v81 = vld [vmem:[%s1 + $0x3c] sm:$0xf]
  %v98 = vunpack.c.l.b16 %v66
  %v99 = vunpack.c.l.b16 %v67
  %v100 = vunpack.c.l.b16 %v68
  %v101 = vunpack.c.l.b16 %v69
  %v102 = vunpack.c.l.b16 %v70
  %v103 = vunpack.c.l.b16 %v71
  %v104 = vunpack.c.l.b16 %v72
  %v105 = vunpack.c.l.b16 %v73
  %v106 = vunpack.c.l.b16 %v74
  %v107 = vunpack.c.l.b16 %v75
  %v108 = vunpack.c.l.b16 %v76
  %v109 = vunpack.c.l.b16 %v77
  %v110 = vunpack.c.l.b16 %v78
  %v111 = vunpack.c.l.b16 %v79
  %v112 = vunpack.c.l.b16 %v80
  %v113 = vunpack.c.l.b16 %v81
  %v114 = vpack.c.b16 %v99, %v98
  %v115 = vpack.c.b16 %v101, %v100
  %v116 = vpack.c.b16 %v103, %v102
  %v117 = vpack.c.b16 %v105, %v104
  %v118 = vpack.c.b16 %v107, %v106
  %v119 = vpack.c.b16 %v109, %v108
  %v120 = vpack.c.b16 %v111, %v110
  %v121 = vpack.c.b16 %v113, %v112
  %130 = vmatprep.subr.bf16.mxu0 0
  %131 = vmatpush1.bf16.msra.mxu0 %v114
  %132 = vmatprep.subr.bf16.mxu0 0
  %133 = vmatpush1.bf16.msra.mxu0 %v115
  %134 = vmatprep.subr.bf16.mxu0 0
  %135 = vmatpush1.bf16.msra.mxu0 %v116
  %136 = vmatprep.subr.bf16.mxu0 0
  %137 = vmatpush1.bf16.msra.mxu0 %v117
  %138 = vmatprep.subr.bf16.mxu0 0
  %139 = vmatpush1.bf16.msra.mxu0 %v118
  %140 = vmatprep.subr.bf16.mxu0 0
  %141 = vmatpush1.bf16.msra.mxu0 %v119
  %142 = vmatprep.subr.bf16.mxu0 0
  %143 = vmatpush1.bf16.msra.mxu0 %v120
  %144 = vmatprep.subr.bf16.mxu0 0
  %145 = vmatpush1.bf16.msra.mxu0 %v121
  %146 = vmatprep.subr.bf16.mxu0 0
  %147 = vmatpush1.bf16.msra.mxu0 0
  %148 = vmatprep.subr.bf16.mxu0 0
  %149 = vmatpush1.bf16.msra.mxu0 0
  %150 = vmatprep.subr.bf16.mxu0 0
  %151 = vmatpush1.bf16.msra.mxu0 0
  %152 = vmatprep.subr.bf16.mxu0 0
  %153 = vmatpush1.bf16.msra.mxu0 0
  %154 = vmatprep.subr.bf16.mxu0 0
  %155 = vmatpush1.bf16.msra.mxu0 0
  %156 = vmatprep.subr.bf16.mxu0 0
  %157 = vmatpush1.bf16.msra.mxu0 0
  %158 = vmatprep.subr.bf16.mxu0 0
  %159 = vmatpush1.bf16.msra.mxu0 0
  %160 = vmatprep.subr.bf16.mxu0 0
  %161 = vmatpush1.bf16.msra.mxu0 0
  %162 = vmatprep.mubr.bf16.mxu0 0
  %163 = vmatmul.mubr.bf16.gmra.mrb[0].mxu0 %v42
  %v164 = vpop.f32.mrb[0].mxu0
  %v165 = vadd.f32 0.0, %v164
  %v166 = vpop.f32.mrb[0].mxu0
  %v167 = vpop.f32.mrb[0].mxu0
  %v168 = vadd.f32 0.0, %v167
  %v169 = vpop.f32.mrb[0].mxu0
  %170 = vmatprep.mubr.bf16.mxu0 0
  %171 = vmatmul.mubr.bf16.gmra.mrb[0].mxu0 %v43
  %v172 = vpop.f32.mrb[0].mxu0
  %v173 = vadd.f32 0.0, %v172
  %v174 = vpop.f32.mrb[0].mxu0
  %v175 = vpop.f32.mrb[0].mxu0
  %v176 = vadd.f32 0.0, %v175
  %v177 = vpop.f32.mrb[0].mxu0
  %178 = vmatprep.mubr.bf16.mxu0 0
  %179 = vmatmul.mubr.bf16.gmra.mrb[0].mxu0 %v44
  %v180 = vpop.f32.mrb[0].mxu0
  %v181 = vadd.f32 0.0, %v180
  %v182 = vpop.f32.mrb[0].mxu0
  %v183 = vpop.f32.mrb[0].mxu0
  %v184 = vadd.f32 0.0, %v183
  %v185 = vpop.f32.mrb[0].mxu0
  %186 = vmatprep.mubr.bf16.mxu0 0
  %187 = vmatmul.mubr.bf16.gmra.mrb[0].mxu0 %v45
  %v188 = vpop.f32.mrb[0].mxu0
  %v189 = vadd.f32 0.0, %v188
  %v190 = vpop.f32.mrb[0].mxu0
  %v191 = vpop.f32.mrb[0].mxu0
  %v192 = vadd.f32 0.0, %v191
  %v193 = vpop.f32.mrb[0].mxu0
  %194 = vmatprep.mubr.bf16.mxu0 0
  %195 = vmatmul.mubr.bf16.gmra.mrb[0].mxu0 %v46
  %v196 = vpop.f32.mrb[0].mxu0
  %v197 = vadd.f32 0.0, %v196
  %v198 = vpop.f32.mrb[0].mxu0
  %v199 = vpop.f32.mrb[0].mxu0
  %v200 = vadd.f32 0.0, %v199
  %v201 = vpop.f32.mrb[0].mxu0
  %202 = vmatprep.mubr.bf16.mxu0 0
  %203 = vmatmul.mubr.bf16.gmra.mrb[0].mxu0 %v47
  %v204 = vpop.f32.mrb[0].mxu0
  %v205 = vadd.f32 0.0, %v204
  %v206 = vpop.f32.mrb[0].mxu0
  %v207 = vpop.f32.mrb[0].mxu0
  %v208 = vadd.f32 0.0, %v207
  %v209 = vpop.f32.mrb[0].mxu0
  %210 = vmatprep.mubr.bf16.mxu0 0
  %211 = vmatmul.mubr.bf16.gmra.mrb[0].mxu0 %v48
  %v212 = vpop.f32.mrb[0].mxu0
  %v213 = vadd.f32 0.0, %v212
  %v214 = vpop.f32.mrb[0].mxu0
  %v215 = vpop.f32.mrb[0].mxu0
  %v216 = vadd.f32 0.0, %v215
  %v217 = vpop.f32.mrb[0].mxu0
  %218 = vmatprep.mubr.bf16.mxu0 0
  %219 = vmatmul.mubr.bf16.gmra.mrb[0].mxu0 %v49
  %v220 = vpop.f32.mrb[0].mxu0
  %v221 = vadd.f32 0.0, %v220
  %v222 = vpop.f32.mrb[0].mxu0
  %v223 = vpop.f32.mrb[0].mxu0
  %v224 = vadd.f32 0.0, %v223
  %v225 = vpop.f32.mrb[0].mxu0
  %226 = vdwg.mxu0
  %v227 = vadd.f32 %v50, %v165
  %v228 = vadd.f32 %v51, %v168
  %v229 = vadd.f32 %v52, %v173
  %v230 = vadd.f32 %v53, %v176
  %v231 = vadd.f32 %v54, %v181
  %v232 = vadd.f32 %v55, %v184
  %v233 = vadd.f32 %v56, %v189
  %v234 = vadd.f32 %v57, %v192
  %v235 = vadd.f32 %v58, %v197
  %v236 = vadd.f32 %v59, %v200
  %v237 = vadd.f32 %v60, %v205
  %v238 = vadd.f32 %v61, %v208
  %v239 = vadd.f32 %v62, %v213
  %v240 = vadd.f32 %v63, %v216
  %v241 = vadd.f32 %v64, %v221
  %v242 = vadd.f32 %v65, %v224
  %243 = vst [vmem:[#allocation2] sm:$0xff] %v227
  %244 = vst [vmem:[#allocation2 + $0x8] sm:$0xff] %v228
  %245 = vst [vmem:[#allocation2 + $0x10] sm:$0xff] %v229
  %246 = vst [vmem:[#allocation2 + $0x18] sm:$0xff] %v230
  %247 = vst [vmem:[#allocation2 + $0x20] sm:$0xff] %v231
  %248 = vst [vmem:[#allocation2 + $0x28] sm:$0xff] %v232
  %249 = vst [vmem:[#allocation2 + $0x30] sm:$0xff] %v233
  %250 = vst [vmem:[#allocation2 + $0x38] sm:$0xff] %v234
  %251 = vst [vmem:[#allocation2 + $0x40] sm:$0xff] %v235
  %252 = vst [vmem:[#allocation2 + $0x48] sm:$0xff] %v236
  %253 = vst [vmem:[#allocation2 + $0x50] sm:$0xff] %v237
  %254 = vst [vmem:[#allocation2 + $0x58] sm:$0xff] %v238
  %255 = vst [vmem:[#allocation2 + $0x60] sm:$0xff] %v239
  %256 = vst [vmem:[#allocation2 + $0x68] sm:$0xff] %v240
  %257 = vst [vmem:[#allocation2 + $0x70] sm:$0xff] %v241
  %258 = vst [vmem:[#allocation2 + $0x78] sm:$0xff] %v242
  // Predicated region
  $region22: #{gcn_forward.5} parent=0 // pred_check
    %p259 = pneg %p18
  $region23: #{gcn_forward.5} parent=0 // pred_check_branch
    %261 = sbr.rel (%p259) target = $region25
  $region24: #{gcn_forward.5} parent=0 // pred_region
    %v262 = vld [vmem:[#allocation2] sm:$0xff]
    %v263 = vld [vmem:[#allocation2 + $0x8] sm:$0xff]
    %v264 = vld [vmem:[#allocation2 + $0x10] sm:$0xff]
    %v265 = vld [vmem:[#allocation2 + $0x18] sm:$0xff]
    %v266 = vld [vmem:[#allocation2 + $0x20] sm:$0xff]
    %v267 = vld [vmem:[#allocation2 + $0x28] sm:$0xff]
    %v268 = vld [vmem:[#allocation2 + $0x30] sm:$0xff]
    %v269 = vld [vmem:[#allocation2 + $0x38] sm:$0xff]
    %v270 = vld [vmem:[#allocation2 + $0x40] sm:$0xff]
    %v271 = vld [vmem:[#allocation2 + $0x48] sm:$0xff]
    %v272 = vld [vmem:[#allocation2 + $0x50] sm:$0xff]
    %v273 = vld [vmem:[#allocation2 + $0x58] sm:$0xff]
    %v274 = vld [vmem:[#allocation2 + $0x60] sm:$0xff]
    %v275 = vld [vmem:[#allocation2 + $0x68] sm:$0xff]
    %v276 = vld [vmem:[#allocation2 + $0x70] sm:$0xff]
    %v277 = vld [vmem:[#allocation2 + $0x78] sm:$0xff]
    %v278 = vld [vmem:[%s2] sm:$0xff]
    %v279 = vld [vmem:[%s2 + $0x8] sm:$0xff]
    %v280 = vld [vmem:[%s2 + $0x10] sm:$0xff]
    %v281 = vld [vmem:[%s2 + $0x18] sm:$0xff]
    %v282 = vld [vmem:[%s2 + $0x20] sm:$0xff]
    %v283 = vld [vmem:[%s2 + $0x28] sm:$0xff]
    %v284 = vld [vmem:[%s2 + $0x30] sm:$0xff]
    %v285 = vld [vmem:[%s2 + $0x38] sm:$0xff]
    %v286 = vld [vmem:[%s2 + $0x40] sm:$0xff]
    %v287 = vld [vmem:[%s2 + $0x48] sm:$0xff]
    %v288 = vld [vmem:[%s2 + $0x50] sm:$0xff]
    %v289 = vld [vmem:[%s2 + $0x58] sm:$0xff]
    %v290 = vld [vmem:[%s2 + $0x60] sm:$0xff]
    %v291 = vld [vmem:[%s2 + $0x68] sm:$0xff]
    %v292 = vld [vmem:[%s2 + $0x70] sm:$0xff]
    %v293 = vld [vmem:[%s2 + $0x78] sm:$0xff]
    %295 = vset.pattern.permute.xlu0 0
    %296 = vperm.xlu0 %295, %v278
    %v297 = vpop.permute.xlu0 %296
    %300 = vset.pattern.permute.xlu0 0
    %301 = vperm.xlu0 %300, %v279
    %v302 = vpop.permute.xlu0 %301
    %305 = vset.pattern.permute.xlu0 0
    %306 = vperm.xlu0 %305, %v280
    %v307 = vpop.permute.xlu0 %306
    %310 = vset.pattern.permute.xlu0 0
    %311 = vperm.xlu0 %310, %v281
    %v312 = vpop.permute.xlu0 %311
    %315 = vset.pattern.permute.xlu0 0
    %316 = vperm.xlu0 %315, %v282
    %v317 = vpop.permute.xlu0 %316
    %320 = vset.pattern.permute.xlu0 0
    %321 = vperm.xlu0 %320, %v283
    %v322 = vpop.permute.xlu0 %321
    %325 = vset.pattern.permute.xlu0 0
    %326 = vperm.xlu0 %325, %v284
    %v327 = vpop.permute.xlu0 %326
    %330 = vset.pattern.permute.xlu0 0
    %331 = vperm.xlu0 %330, %v285
    %v332 = vpop.permute.xlu0 %331
    %335 = vset.pattern.permute.xlu0 0
    %336 = vperm.xlu0 %335, %v286
    %v337 = vpop.permute.xlu0 %336
    %340 = vset.pattern.permute.xlu0 0
    %341 = vperm.xlu0 %340, %v287
    %v342 = vpop.permute.xlu0 %341
    %345 = vset.pattern.permute.xlu0 0
    %346 = vperm.xlu0 %345, %v288
    %v347 = vpop.permute.xlu0 %346
    %350 = vset.pattern.permute.xlu0 0
    %351 = vperm.xlu0 %350, %v289
    %v352 = vpop.permute.xlu0 %351
    %355 = vset.pattern.permute.xlu0 0
    %356 = vperm.xlu0 %355, %v290
    %v357 = vpop.permute.xlu0 %356
    %360 = vset.pattern.permute.xlu0 0
    %361 = vperm.xlu0 %360, %v291
    %v362 = vpop.permute.xlu0 %361
    %365 = vset.pattern.permute.xlu0 0
    %366 = vperm.xlu0 %365, %v292
    %v367 = vpop.permute.xlu0 %366
    %370 = vset.pattern.permute.xlu0 0
    %371 = vperm.xlu0 %370, %v293
    %v372 = vpop.permute.xlu0 %371
    %v374 = vmul.f32 %v262, %v297
    %v375 = vmul.f32 %v263, %v302
    %v376 = vmul.f32 %v264, %v307
    %v377 = vmul.f32 %v265, %v312
    %v378 = vmul.f32 %v266, %v317
    %v379 = vmul.f32 %v267, %v322
    %v380 = vmul.f32 %v268, %v327
    %v381 = vmul.f32 %v269, %v332
    %v382 = vmul.f32 %v270, %v337
    %v383 = vmul.f32 %v271, %v342
    %v384 = vmul.f32 %v272, %v347
    %v385 = vmul.f32 %v273, %v352
    %v386 = vmul.f32 %v274, %v357
    %v387 = vmul.f32 %v275, %v362
    %v388 = vmul.f32 %v276, %v367
    %v389 = vmul.f32 %v277, %v372
    %v390 = vld [vmem:[%s3] sm:$0x1]
    %v392 = vlaneseq
    %v393 = vshrl.u32 %v392, 7
    %v394 = vsub.s32 0, %v393
    %v395 = vrot.slane %v390, %v394
    %v397 = vadd.f32 %v374, %v395
    %v398 = vadd.f32 %v375, %v395
    %v399 = vadd.f32 %v376, %v395
    %v400 = vadd.f32 %v377, %v395
    %v401 = vadd.f32 %v378, %v395
    %v402 = vadd.f32 %v379, %v395
    %v403 = vadd.f32 %v380, %v395
    %v404 = vadd.f32 %v381, %v395
    %v405 = vadd.f32 %v382, %v395
    %v406 = vadd.f32 %v383, %v395
    %v407 = vadd.f32 %v384, %v395
    %v408 = vadd.f32 %v385, %v395
    %v409 = vadd.f32 %v386, %v395
    %v410 = vadd.f32 %v387, %v395
    %v411 = vadd.f32 %v388, %v395
    %v412 = vadd.f32 %v389, %v395
    %v413 = vmax.f32 %v397, 0.0
    %v414 = vmax.f32 %v398, 0.0
    %v415 = vmax.f32 %v399, 0.0
    %v416 = vmax.f32 %v400, 0.0
    %v417 = vmax.f32 %v401, 0.0
    %v418 = vmax.f32 %v402, 0.0
    %v419 = vmax.f32 %v403, 0.0
    %v420 = vmax.f32 %v404, 0.0
    %v421 = vmax.f32 %v405, 0.0
    %v422 = vmax.f32 %v406, 0.0
    %v423 = vmax.f32 %v407, 0.0
    %v424 = vmax.f32 %v408, 0.0
    %v425 = vmax.f32 %v409, 0.0
    %v426 = vmax.f32 %v410, 0.0
    %v427 = vmax.f32 %v411, 0.0
    %v428 = vmax.f32 %v412, 0.0
    %v429 = vpack.c.bf16 %v414, %v413
    %v430 = vpack.c.bf16 %v416, %v415
    %v431 = vpack.c.bf16 %v418, %v417
    %v432 = vpack.c.bf16 %v420, %v419
    %v433 = vpack.c.bf16 %v422, %v421
    %v434 = vpack.c.bf16 %v424, %v423
    %v435 = vpack.c.bf16 %v426, %v425
    %v436 = vpack.c.bf16 %v428, %v427
    %v445 = vunpack.c.l.b16 %v429
    %v446 = vunpack.c.h.b16 %v429
    %v447 = vunpack.c.l.b16 %v430
    %v448 = vunpack.c.h.b16 %v430
    %v449 = vunpack.c.l.b16 %v431
    %v450 = vunpack.c.h.b16 %v431
    %v451 = vunpack.c.l.b16 %v432
    %v452 = vunpack.c.h.b16 %v432
    %v453 = vunpack.c.l.b16 %v433
    %v454 = vunpack.c.h.b16 %v433
    %v455 = vunpack.c.l.b16 %v434
    %v456 = vunpack.c.h.b16 %v434
    %v457 = vunpack.c.l.b16 %v435
    %v458 = vunpack.c.h.b16 %v435
    %v459 = vunpack.c.l.b16 %v436
    %v460 = vunpack.c.h.b16 %v436
    %v461 = vpack.c.b16 %v445, %v445
    %v462 = vpack.c.b16 %v446, %v446
    %v463 = vpack.c.b16 %v447, %v447
    %v464 = vpack.c.b16 %v448, %v448
    %v465 = vpack.c.b16 %v449, %v449
    %v466 = vpack.c.b16 %v450, %v450
    %v467 = vpack.c.b16 %v451, %v451
    %v468 = vpack.c.b16 %v452, %v452
    %v469 = vpack.c.b16 %v453, %v453
    %v470 = vpack.c.b16 %v454, %v454
    %v471 = vpack.c.b16 %v455, %v455
    %v472 = vpack.c.b16 %v456, %v456
    %v473 = vpack.c.b16 %v457, %v457
    %v474 = vpack.c.b16 %v458, %v458
    %v475 = vpack.c.b16 %v459, %v459
    %v476 = vpack.c.b16 %v460, %v460
    %493 = vst [vmem:[%s4] sm:$0xf] %v461
    %494 = vst [vmem:[%s4 + $0x4] sm:$0xf] %v462
    %495 = vst [vmem:[%s4 + $0x8] sm:$0xf] %v463
    %496 = vst [vmem:[%s4 + $0xc] sm:$0xf] %v464
    %497 = vst [vmem:[%s4 + $0x10] sm:$0xf] %v465
    %498 = vst [vmem:[%s4 + $0x14] sm:$0xf] %v466
    %499 = vst [vmem:[%s4 + $0x18] sm:$0xf] %v467
    %500 = vst [vmem:[%s4 + $0x1c] sm:$0xf] %v468
    %501 = vst [vmem:[%s4 + $0x20] sm:$0xf] %v469
    %502 = vst [vmem:[%s4 + $0x24] sm:$0xf] %v470
    %503 = vst [vmem:[%s4 + $0x28] sm:$0xf] %v471
    %504 = vst [vmem:[%s4 + $0x2c] sm:$0xf] %v472
    %505 = vst [vmem:[%s4 + $0x30] sm:$0xf] %v473
    %506 = vst [vmem:[%s4 + $0x34] sm:$0xf] %v474
    %507 = vst [vmem:[%s4 + $0x38] sm:$0xf] %v475
    %508 = vst [vmem:[%s4 + $0x3c] sm:$0xf] %v476
  $region25: #{gcn_forward.5} parent=0 // pred_fallthru
    _
  // Predicated region
  $region26: #{gcn_forward.5} parent=0 // pred_check
    _
  $region27: #{gcn_forward.5} parent=0 // pred_check_branch
    %510 = sbr.rel (0) target = $region29
  $region28: #{gcn_forward.5} parent=0 // pred_region
    _
  $region29: #{gcn_forward.5} parent=0 // pred_fallthru
    _
  // Predicated region
  $region30: #{gcn_forward.5} parent=0 // pred_check
    _
  $region31: #{gcn_forward.5} parent=0 // pred_check_branch
    %512 = sbr.rel (0) target = $region33
  $region32: #{gcn_forward.5} parent=0 // pred_region
    _
  $region33: #{gcn_forward.5} parent=0 // pred_fallthru
    _

// kernel: gcn_forward.7
$region0: #{gcn_forward.7}
  #allocation0 [shape = 'u32[]', space=smem, size = 0x4, offset = 0x4, fixed_abs, tag = 'smem constant byte address 0x4 - core index']
  #allocation1 [shape = 'u32[144,128]{1,0:T(1,128)}', space=vmem, size = 0x12000, scoped, tag = 'internal scratch']
  #allocation2 [shape = 'f32[128,128]{1,0:T(8,128)}', space=vmem, size = 0x10000, scoped, tag = 'scratch operand']
  %s0 = inlined_call_operand.vmem [shape: s8[128,128], index: 0, kind: input, shape index: {}]
  %s1 = inlined_call_operand.vmem [shape: bf16[128,128], index: 1, kind: input, shape index: {}]
  %s2 = inlined_call_operand.vmem [shape: f32[128,1], index: 2, kind: input, shape index: {}]
  %s3 = inlined_call_operand.vmem [shape: f32[1,128], index: 3, kind: input, shape index: {}]
  %s4 = inlined_call_operand.vmem [shape: f32[128,128], index: 4, kind: output, shape index: {}]
  %s5 = sld [smem:[#allocation0]]
  $region34: #{gcn_forward.7} parent=0
    _
  %s7 = ssub.s32 1, %s5
  %s8 = scalar_select 0, %s7, %s5
  // Predicated region
  $region2: #{gcn_forward.7} parent=0 // pred_check
    _
  $region3: #{gcn_forward.7} parent=0 // pred_check_branch
    %10 = sbr.rel (0) target = $region5
  $region4: #{gcn_forward.7} parent=0 // pred_region
    _
  $region5: #{gcn_forward.7} parent=0 // pred_fallthru
    _
  // Predicated region
  $region6: #{gcn_forward.7} parent=0 // pred_check
    _
  $region7: #{gcn_forward.7} parent=0 // pred_check_branch
    %12 = sbr.rel (0) target = $region9
  $region8: #{gcn_forward.7} parent=0 // pred_region
    _
  $region9: #{gcn_forward.7} parent=0 // pred_fallthru
    _
  // Predicated region
  $region10: #{gcn_forward.7} parent=0 // pred_check
    _
  $region11: #{gcn_forward.7} parent=0 // pred_check_branch
    %14 = sbr.rel (0) target = $region13
  $region12: #{gcn_forward.7} parent=0 // pred_region
    _
  $region13: #{gcn_forward.7} parent=0 // pred_fallthru
    _
  // Predicated region
  $region14: #{gcn_forward.7} parent=0 // pred_check
    _
  $region15: #{gcn_forward.7} parent=0 // pred_check_branch
    %16 = sbr.rel (0) target = $region17
  $region16: #{gcn_forward.7} parent=0 // pred_region
    _
  $region17: #{gcn_forward.7} parent=0 // pred_fallthru
    _
  %p18 = scmp.eq.s32.totalorder 0, 0
  // Predicated region
  $region18: #{gcn_forward.7} parent=0 // pred_check
    %p19 = pneg %p18
  $region19: #{gcn_forward.7} parent=0 // pred_check_branch
    %21 = sbr.rel (%p19) target = $region21
  $region20: #{gcn_forward.7} parent=0 // pred_region
    %22 = vst [vmem:[#allocation2] sm:$0xff] 0.0
    %23 = vst [vmem:[#allocation2 + $0x8] sm:$0xff] 0.0
    %24 = vst [vmem:[#allocation2 + $0x10] sm:$0xff] 0.0
    %25 = vst [vmem:[#allocation2 + $0x18] sm:$0xff] 0.0
    %26 = vst [vmem:[#allocation2 + $0x20] sm:$0xff] 0.0
    %27 = vst [vmem:[#allocation2 + $0x28] sm:$0xff] 0.0
    %28 = vst [vmem:[#allocation2 + $0x30] sm:$0xff] 0.0
    %29 = vst [vmem:[#allocation2 + $0x38] sm:$0xff] 0.0
    %30 = vst [vmem:[#allocation2 + $0x40] sm:$0xff] 0.0
    %31 = vst [vmem:[#allocation2 + $0x48] sm:$0xff] 0.0
    %32 = vst [vmem:[#allocation2 + $0x50] sm:$0xff] 0.0
    %33 = vst [vmem:[#allocation2 + $0x58] sm:$0xff] 0.0
    %34 = vst [vmem:[#allocation2 + $0x60] sm:$0xff] 0.0
    %35 = vst [vmem:[#allocation2 + $0x68] sm:$0xff] 0.0
    %36 = vst [vmem:[#allocation2 + $0x70] sm:$0xff] 0.0
    %37 = vst [vmem:[#allocation2 + $0x78] sm:$0xff] 0.0
  $region21: #{gcn_forward.7} parent=0 // pred_fallthru
    _
  %v38 = vld [vmem:[%s0] sm:$0xff]
  %v39 = vld [vmem:[%s0 + $0x8] sm:$0xff]
  %v40 = vld [vmem:[%s0 + $0x10] sm:$0xff]
  %v41 = vld [vmem:[%s0 + $0x18] sm:$0xff]
  %v42 = vunpack.c.l.s8.bf16 %v38
  %v43 = vunpack.c.h.s8.bf16 %v38
  %v44 = vunpack.c.l.s8.bf16 %v39
  %v45 = vunpack.c.h.s8.bf16 %v39
  %v46 = vunpack.c.l.s8.bf16 %v40
  %v47 = vunpack.c.h.s8.bf16 %v40
  %v48 = vunpack.c.l.s8.bf16 %v41
  %v49 = vunpack.c.h.s8.bf16 %v41
  %v50 = vld [vmem:[#allocation2] sm:$0xff]
  %v51 = vld [vmem:[#allocation2 + $0x8] sm:$0xff]
  %v52 = vld [vmem:[#allocation2 + $0x10] sm:$0xff]
  %v53 = vld [vmem:[#allocation2 + $0x18] sm:$0xff]
  %v54 = vld [vmem:[#allocation2 + $0x20] sm:$0xff]
  %v55 = vld [vmem:[#allocation2 + $0x28] sm:$0xff]
  %v56 = vld [vmem:[#allocation2 + $0x30] sm:$0xff]
  %v57 = vld [vmem:[#allocation2 + $0x38] sm:$0xff]
  %v58 = vld [vmem:[#allocation2 + $0x40] sm:$0xff]
  %v59 = vld [vmem:[#allocation2 + $0x48] sm:$0xff]
  %v60 = vld [vmem:[#allocation2 + $0x50] sm:$0xff]
  %v61 = vld [vmem:[#allocation2 + $0x58] sm:$0xff]
  %v62 = vld [vmem:[#allocation2 + $0x60] sm:$0xff]
  %v63 = vld [vmem:[#allocation2 + $0x68] sm:$0xff]
  %v64 = vld [vmem:[#allocation2 + $0x70] sm:$0xff]
  %v65 = vld [vmem:[#allocation2 + $0x78] sm:$0xff]
  %v66 = vld [vmem:[%s1] sm:$0xf]
  %v67 = vld [vmem:[%s1 + $0x4] sm:$0xf]
  %v68 = vld [vmem:[%s1 + $0x8] sm:$0xf]
  %v69 = vld [vmem:[%s1 + $0xc] sm:$0xf]
  %v70 = vld [vmem:[%s1 + $0x10] sm:$0xf]
  %v71 = vld [vmem:[%s1 + $0x14] sm:$0xf]
  %v72 = vld [vmem:[%s1 + $0x18] sm:$0xf]
  %v73 = vld [vmem:[%s1 + $0x1c] sm:$0xf]
  %v74 = vld [vmem:[%s1 + $0x20] sm:$0xf]
  %v75 = vld [vmem:[%s1 + $0x24] sm:$0xf]
  %v76 = vld [vmem:[%s1 + $0x28] sm:$0xf]
  %v77 = vld [vmem:[%s1 + $0x2c] sm:$0xf]
  %v78 = vld [vmem:[%s1 + $0x30] sm:$0xf]
  %v79 = vld [vmem:[%s1 + $0x34] sm:$0xf]
  %v80 = vld [vmem:[%s1 + $0x38] sm:$0xf]
  %v81 = vld [vmem:[%s1 + $0x3c] sm:$0xf]
  %v98 = vunpack.c.l.b16 %v66
  %v99 = vunpack.c.l.b16 %v67
  %v100 = vunpack.c.l.b16 %v68
  %v101 = vunpack.c.l.b16 %v69
  %v102 = vunpack.c.l.b16 %v70
  %v103 = vunpack.c.l.b16 %v71
  %v104 = vunpack.c.l.b16 %v72
  %v105 = vunpack.c.l.b16 %v73
  %v106 = vunpack.c.l.b16 %v74
  %v107 = vunpack.c.l.b16 %v75
  %v108 = vunpack.c.l.b16 %v76
  %v109 = vunpack.c.l.b16 %v77
  %v110 = vunpack.c.l.b16 %v78
  %v111 = vunpack.c.l.b16 %v79
  %v112 = vunpack.c.l.b16 %v80
  %v113 = vunpack.c.l.b16 %v81
  %v114 = vpack.c.b16 %v99, %v98
  %v115 = vpack.c.b16 %v101, %v100
  %v116 = vpack.c.b16 %v103, %v102
  %v117 = vpack.c.b16 %v105, %v104
  %v118 = vpack.c.b16 %v107, %v106
  %v119 = vpack.c.b16 %v109, %v108
  %v120 = vpack.c.b16 %v111, %v110
  %v121 = vpack.c.b16 %v113, %v112
  %130 = vmatprep.subr.bf16.mxu0 0
  %131 = vmatpush1.bf16.msra.mxu0 %v114
  %132 = vmatprep.subr.bf16.mxu0 0
  %133 = vmatpush1.bf16.msra.mxu0 %v115
  %134 = vmatprep.subr.bf16.mxu0 0
  %135 = vmatpush1.bf16.msra.mxu0 %v116
  %136 = vmatprep.subr.bf16.mxu0 0
  %137 = vmatpush1.bf16.msra.mxu0 %v117
  %138 = vmatprep.subr.bf16.mxu0 0
  %139 = vmatpush1.bf16.msra.mxu0 %v118
  %140 = vmatprep.subr.bf16.mxu0 0
  %141 = vmatpush1.bf16.msra.mxu0 %v119
  %142 = vmatprep.subr.bf16.mxu0 0
  %143 = vmatpush1.bf16.msra.mxu0 %v120
  %144 = vmatprep.subr.bf16.mxu0 0
  %145 = vmatpush1.bf16.msra.mxu0 %v121
  %146 = vmatprep.subr.bf16.mxu0 0
  %147 = vmatpush1.bf16.msra.mxu0 0
  %148 = vmatprep.subr.bf16.mxu0 0
  %149 = vmatpush1.bf16.msra.mxu0 0
  %150 = vmatprep.subr.bf16.mxu0 0
  %151 = vmatpush1.bf16.msra.mxu0 0
  %152 = vmatprep.subr.bf16.mxu0 0
  %153 = vmatpush1.bf16.msra.mxu0 0
  %154 = vmatprep.subr.bf16.mxu0 0
  %155 = vmatpush1.bf16.msra.mxu0 0
  %156 = vmatprep.subr.bf16.mxu0 0
  %157 = vmatpush1.bf16.msra.mxu0 0
  %158 = vmatprep.subr.bf16.mxu0 0
  %159 = vmatpush1.bf16.msra.mxu0 0
  %160 = vmatprep.subr.bf16.mxu0 0
  %161 = vmatpush1.bf16.msra.mxu0 0
  %162 = vmatprep.mubr.bf16.mxu0 0
  %163 = vmatmul.mubr.bf16.gmra.mrb[0].mxu0 %v42
  %v164 = vpop.f32.mrb[0].mxu0
  %v165 = vadd.f32 0.0, %v164
  %v166 = vpop.f32.mrb[0].mxu0
  %v167 = vpop.f32.mrb[0].mxu0
  %v168 = vadd.f32 0.0, %v167
  %v169 = vpop.f32.mrb[0].mxu0
  %170 = vmatprep.mubr.bf16.mxu0 0
  %171 = vmatmul.mubr.bf16.gmra.mrb[0].mxu0 %v43
  %v172 = vpop.f32.mrb[0].mxu0
  %v173 = vadd.f32 0.0, %v172
  %v174 = vpop.f32.mrb[0].mxu0
  %v175 = vpop.f32.mrb[0].mxu0
  %v176 = vadd.f32 0.0, %v175
  %v177 = vpop.f32.mrb[0].mxu0
  %178 = vmatprep.mubr.bf16.mxu0 0
  %179 = vmatmul.mubr.bf16.gmra.mrb[0].mxu0 %v44
  %v180 = vpop.f32.mrb[0].mxu0
  %v181 = vadd.f32 0.0, %v180
  %v182 = vpop.f32.mrb[0].mxu0
  %v183 = vpop.f32.mrb[0].mxu0
  %v184 = vadd.f32 0.0, %v183
  %v185 = vpop.f32.mrb[0].mxu0
  %186 = vmatprep.mubr.bf16.mxu0 0
  %187 = vmatmul.mubr.bf16.gmra.mrb[0].mxu0 %v45
  %v188 = vpop.f32.mrb[0].mxu0
  %v189 = vadd.f32 0.0, %v188
  %v190 = vpop.f32.mrb[0].mxu0
  %v191 = vpop.f32.mrb[0].mxu0
  %v192 = vadd.f32 0.0, %v191
  %v193 = vpop.f32.mrb[0].mxu0
  %194 = vmatprep.mubr.bf16.mxu0 0
  %195 = vmatmul.mubr.bf16.gmra.mrb[0].mxu0 %v46
  %v196 = vpop.f32.mrb[0].mxu0
  %v197 = vadd.f32 0.0, %v196
  %v198 = vpop.f32.mrb[0].mxu0
  %v199 = vpop.f32.mrb[0].mxu0
  %v200 = vadd.f32 0.0, %v199
  %v201 = vpop.f32.mrb[0].mxu0
  %202 = vmatprep.mubr.bf16.mxu0 0
  %203 = vmatmul.mubr.bf16.gmra.mrb[0].mxu0 %v47
  %v204 = vpop.f32.mrb[0].mxu0
  %v205 = vadd.f32 0.0, %v204
  %v206 = vpop.f32.mrb[0].mxu0
  %v207 = vpop.f32.mrb[0].mxu0
  %v208 = vadd.f32 0.0, %v207
  %v209 = vpop.f32.mrb[0].mxu0
  %210 = vmatprep.mubr.bf16.mxu0 0
  %211 = vmatmul.mubr.bf16.gmra.mrb[0].mxu0 %v48
  %v212 = vpop.f32.mrb[0].mxu0
  %v213 = vadd.f32 0.0, %v212
  %v214 = vpop.f32.mrb[0].mxu0
  %v215 = vpop.f32.mrb[0].mxu0
  %v216 = vadd.f32 0.0, %v215
  %v217 = vpop.f32.mrb[0].mxu0
  %218 = vmatprep.mubr.bf16.mxu0 0
  %219 = vmatmul.mubr.bf16.gmra.mrb[0].mxu0 %v49
  %v220 = vpop.f32.mrb[0].mxu0
  %v221 = vadd.f32 0.0, %v220
  %v222 = vpop.f32.mrb[0].mxu0
  %v223 = vpop.f32.mrb[0].mxu0
  %v224 = vadd.f32 0.0, %v223
  %v225 = vpop.f32.mrb[0].mxu0
  %226 = vdwg.mxu0
  %v227 = vadd.f32 %v50, %v165
  %v228 = vadd.f32 %v51, %v168
  %v229 = vadd.f32 %v52, %v173
  %v230 = vadd.f32 %v53, %v176
  %v231 = vadd.f32 %v54, %v181
  %v232 = vadd.f32 %v55, %v184
  %v233 = vadd.f32 %v56, %v189
  %v234 = vadd.f32 %v57, %v192
  %v235 = vadd.f32 %v58, %v197
  %v236 = vadd.f32 %v59, %v200
  %v237 = vadd.f32 %v60, %v205
  %v238 = vadd.f32 %v61, %v208
  %v239 = vadd.f32 %v62, %v213
  %v240 = vadd.f32 %v63, %v216
  %v241 = vadd.f32 %v64, %v221
  %v242 = vadd.f32 %v65, %v224
  %243 = vst [vmem:[#allocation2] sm:$0xff] %v227
  %244 = vst [vmem:[#allocation2 + $0x8] sm:$0xff] %v228
  %245 = vst [vmem:[#allocation2 + $0x10] sm:$0xff] %v229
  %246 = vst [vmem:[#allocation2 + $0x18] sm:$0xff] %v230
  %247 = vst [vmem:[#allocation2 + $0x20] sm:$0xff] %v231
  %248 = vst [vmem:[#allocation2 + $0x28] sm:$0xff] %v232
  %249 = vst [vmem:[#allocation2 + $0x30] sm:$0xff] %v233
  %250 = vst [vmem:[#allocation2 + $0x38] sm:$0xff] %v234
  %251 = vst [vmem:[#allocation2 + $0x40] sm:$0xff] %v235
  %252 = vst [vmem:[#allocation2 + $0x48] sm:$0xff] %v236
  %253 = vst [vmem:[#allocation2 + $0x50] sm:$0xff] %v237
  %254 = vst [vmem:[#allocation2 + $0x58] sm:$0xff] %v238
  %255 = vst [vmem:[#allocation2 + $0x60] sm:$0xff] %v239
  %256 = vst [vmem:[#allocation2 + $0x68] sm:$0xff] %v240
  %257 = vst [vmem:[#allocation2 + $0x70] sm:$0xff] %v241
  %258 = vst [vmem:[#allocation2 + $0x78] sm:$0xff] %v242
  // Predicated region
  $region22: #{gcn_forward.7} parent=0 // pred_check
    %p259 = pneg %p18
  $region23: #{gcn_forward.7} parent=0 // pred_check_branch
    %261 = sbr.rel (%p259) target = $region25
  $region24: #{gcn_forward.7} parent=0 // pred_region
    %v262 = vld [vmem:[#allocation2] sm:$0xff]
    %v263 = vld [vmem:[#allocation2 + $0x8] sm:$0xff]
    %v264 = vld [vmem:[#allocation2 + $0x10] sm:$0xff]
    %v265 = vld [vmem:[#allocation2 + $0x18] sm:$0xff]
    %v266 = vld [vmem:[#allocation2 + $0x20] sm:$0xff]
    %v267 = vld [vmem:[#allocation2 + $0x28] sm:$0xff]
    %v268 = vld [vmem:[#allocation2 + $0x30] sm:$0xff]
    %v269 = vld [vmem:[#allocation2 + $0x38] sm:$0xff]
    %v270 = vld [vmem:[#allocation2 + $0x40] sm:$0xff]
    %v271 = vld [vmem:[#allocation2 + $0x48] sm:$0xff]
    %v272 = vld [vmem:[#allocation2 + $0x50] sm:$0xff]
    %v273 = vld [vmem:[#allocation2 + $0x58] sm:$0xff]
    %v274 = vld [vmem:[#allocation2 + $0x60] sm:$0xff]
    %v275 = vld [vmem:[#allocation2 + $0x68] sm:$0xff]
    %v276 = vld [vmem:[#allocation2 + $0x70] sm:$0xff]
    %v277 = vld [vmem:[#allocation2 + $0x78] sm:$0xff]
    %v278 = vld [vmem:[%s2] sm:$0xff]
    %v279 = vld [vmem:[%s2 + $0x8] sm:$0xff]
    %v280 = vld [vmem:[%s2 + $0x10] sm:$0xff]
    %v281 = vld [vmem:[%s2 + $0x18] sm:$0xff]
    %v282 = vld [vmem:[%s2 + $0x20] sm:$0xff]
    %v283 = vld [vmem:[%s2 + $0x28] sm:$0xff]
    %v284 = vld [vmem:[%s2 + $0x30] sm:$0xff]
    %v285 = vld [vmem:[%s2 + $0x38] sm:$0xff]
    %v286 = vld [vmem:[%s2 + $0x40] sm:$0xff]
    %v287 = vld [vmem:[%s2 + $0x48] sm:$0xff]
    %v288 = vld [vmem:[%s2 + $0x50] sm:$0xff]
    %v289 = vld [vmem:[%s2 + $0x58] sm:$0xff]
    %v290 = vld [vmem:[%s2 + $0x60] sm:$0xff]
    %v291 = vld [vmem:[%s2 + $0x68] sm:$0xff]
    %v292 = vld [vmem:[%s2 + $0x70] sm:$0xff]
    %v293 = vld [vmem:[%s2 + $0x78] sm:$0xff]
    %295 = vset.pattern.permute.xlu0 0
    %296 = vperm.xlu0 %295, %v278
    %v297 = vpop.permute.xlu0 %296
    %300 = vset.pattern.permute.xlu0 0
    %301 = vperm.xlu0 %300, %v279
    %v302 = vpop.permute.xlu0 %301
    %305 = vset.pattern.permute.xlu0 0
    %306 = vperm.xlu0 %305, %v280
    %v307 = vpop.permute.xlu0 %306
    %310 = vset.pattern.permute.xlu0 0
    %311 = vperm.xlu0 %310, %v281
    %v312 = vpop.permute.xlu0 %311
    %315 = vset.pattern.permute.xlu0 0
    %316 = vperm.xlu0 %315, %v282
    %v317 = vpop.permute.xlu0 %316
    %320 = vset.pattern.permute.xlu0 0
    %321 = vperm.xlu0 %320, %v283
    %v322 = vpop.permute.xlu0 %321
    %325 = vset.pattern.permute.xlu0 0
    %326 = vperm.xlu0 %325, %v284
    %v327 = vpop.permute.xlu0 %326
    %330 = vset.pattern.permute.xlu0 0
    %331 = vperm.xlu0 %330, %v285
    %v332 = vpop.permute.xlu0 %331
    %335 = vset.pattern.permute.xlu0 0
    %336 = vperm.xlu0 %335, %v286
    %v337 = vpop.permute.xlu0 %336
    %340 = vset.pattern.permute.xlu0 0
    %341 = vperm.xlu0 %340, %v287
    %v342 = vpop.permute.xlu0 %341
    %345 = vset.pattern.permute.xlu0 0
    %346 = vperm.xlu0 %345, %v288
    %v347 = vpop.permute.xlu0 %346
    %350 = vset.pattern.permute.xlu0 0
    %351 = vperm.xlu0 %350, %v289
    %v352 = vpop.permute.xlu0 %351
    %355 = vset.pattern.permute.xlu0 0
    %356 = vperm.xlu0 %355, %v290
    %v357 = vpop.permute.xlu0 %356
    %360 = vset.pattern.permute.xlu0 0
    %361 = vperm.xlu0 %360, %v291
    %v362 = vpop.permute.xlu0 %361
    %365 = vset.pattern.permute.xlu0 0
    %366 = vperm.xlu0 %365, %v292
    %v367 = vpop.permute.xlu0 %366
    %370 = vset.pattern.permute.xlu0 0
    %371 = vperm.xlu0 %370, %v293
    %v372 = vpop.permute.xlu0 %371
    %v374 = vmul.f32 %v262, %v297
    %v375 = vmul.f32 %v263, %v302
    %v376 = vmul.f32 %v264, %v307
    %v377 = vmul.f32 %v265, %v312
    %v378 = vmul.f32 %v266, %v317
    %v379 = vmul.f32 %v267, %v322
    %v380 = vmul.f32 %v268, %v327
    %v381 = vmul.f32 %v269, %v332
    %v382 = vmul.f32 %v270, %v337
    %v383 = vmul.f32 %v271, %v342
    %v384 = vmul.f32 %v272, %v347
    %v385 = vmul.f32 %v273, %v352
    %v386 = vmul.f32 %v274, %v357
    %v387 = vmul.f32 %v275, %v362
    %v388 = vmul.f32 %v276, %v367
    %v389 = vmul.f32 %v277, %v372
    %v390 = vld [vmem:[%s3] sm:$0x1]
    %v392 = vlaneseq
    %v393 = vshrl.u32 %v392, 7
    %v394 = vsub.s32 0, %v393
    %v395 = vrot.slane %v390, %v394
    %v397 = vadd.f32 %v374, %v395
    %v398 = vadd.f32 %v375, %v395
    %v399 = vadd.f32 %v376, %v395
    %v400 = vadd.f32 %v377, %v395
    %v401 = vadd.f32 %v378, %v395
    %v402 = vadd.f32 %v379, %v395
    %v403 = vadd.f32 %v380, %v395
    %v404 = vadd.f32 %v381, %v395
    %v405 = vadd.f32 %v382, %v395
    %v406 = vadd.f32 %v383, %v395
    %v407 = vadd.f32 %v384, %v395
    %v408 = vadd.f32 %v385, %v395
    %v409 = vadd.f32 %v386, %v395
    %v410 = vadd.f32 %v387, %v395
    %v411 = vadd.f32 %v388, %v395
    %v412 = vadd.f32 %v389, %v395
    %v413 = vlaneseq
    %v414 = vand.u32 %v413, 127
    %vm415 = vcmp.lt.s32.totalorder %v414, 8
    %v416 = vsel %vm415, %v397, -inf
    %v417 = vsel %vm415, %v398, -inf
    %v418 = vsel %vm415, %v399, -inf
    %v419 = vsel %vm415, %v400, -inf
    %v420 = vsel %vm415, %v401, -inf
    %v421 = vsel %vm415, %v402, -inf
    %v422 = vsel %vm415, %v403, -inf
    %v423 = vsel %vm415, %v404, -inf
    %v424 = vsel %vm415, %v405, -inf
    %v425 = vsel %vm415, %v406, -inf
    %v426 = vsel %vm415, %v407, -inf
    %v427 = vsel %vm415, %v408, -inf
    %v428 = vsel %vm415, %v409, -inf
    %v429 = vsel %vm415, %v410, -inf
    %v430 = vsel %vm415, %v411, -inf
    %v431 = vsel %vm415, %v412, -inf
    %432 = vmax.xlane.f32.xlu0 %v416
    %v433 = vpop.xlane.xlu0 %432
    %434 = vmax.xlane.f32.xlu0 %v417
    %v435 = vpop.xlane.xlu0 %434
    %436 = vmax.xlane.f32.xlu0 %v418
    %v437 = vpop.xlane.xlu0 %436
    %438 = vmax.xlane.f32.xlu0 %v419
    %v439 = vpop.xlane.xlu0 %438
    %440 = vmax.xlane.f32.xlu0 %v420
    %v441 = vpop.xlane.xlu0 %440
    %442 = vmax.xlane.f32.xlu0 %v421
    %v443 = vpop.xlane.xlu0 %442
    %444 = vmax.xlane.f32.xlu0 %v422
    %v445 = vpop.xlane.xlu0 %444
    %446 = vmax.xlane.f32.xlu0 %v423
    %v447 = vpop.xlane.xlu0 %446
    %448 = vmax.xlane.f32.xlu0 %v424
    %v449 = vpop.xlane.xlu0 %448
    %450 = vmax.xlane.f32.xlu0 %v425
    %v451 = vpop.xlane.xlu0 %450
    %452 = vmax.xlane.f32.xlu0 %v426
    %v453 = vpop.xlane.xlu0 %452
    %454 = vmax.xlane.f32.xlu0 %v427
    %v455 = vpop.xlane.xlu0 %454
    %456 = vmax.xlane.f32.xlu0 %v428
    %v457 = vpop.xlane.xlu0 %456
    %458 = vmax.xlane.f32.xlu0 %v429
    %v459 = vpop.xlane.xlu0 %458
    %460 = vmax.xlane.f32.xlu0 %v430
    %v461 = vpop.xlane.xlu0 %460
    %462 = vmax.xlane.f32.xlu0 %v431
    %v463 = vpop.xlane.xlu0 %462
    %v464 = vsub.f32 %v416, %v433
    %v465 = vsub.f32 %v417, %v435
    %v466 = vsub.f32 %v418, %v437
    %v467 = vsub.f32 %v419, %v439
    %v468 = vsub.f32 %v420, %v441
    %v469 = vsub.f32 %v421, %v443
    %v470 = vsub.f32 %v422, %v445
    %v471 = vsub.f32 %v423, %v447
    %v472 = vsub.f32 %v424, %v449
    %v473 = vsub.f32 %v425, %v451
    %v474 = vsub.f32 %v426, %v453
    %v475 = vsub.f32 %v427, %v455
    %v476 = vsub.f32 %v428, %v457
    %v477 = vsub.f32 %v429, %v459
    %v478 = vsub.f32 %v430, %v461
    %v479 = vsub.f32 %v431, %v463
    %v480 = vmul.f32 %v464, 1.442695
    %v481 = vpow.pop %v480
    %v482 = vmul.f32 %v465, 1.442695
    %v483 = vpow.pop %v482
    %v484 = vmul.f32 %v466, 1.442695
    %v485 = vpow.pop %v484
    %v486 = vmul.f32 %v467, 1.442695
    %v487 = vpow.pop %v486
    %v488 = vmul.f32 %v468, 1.442695
    %v489 = vpow.pop %v488
    %v490 = vmul.f32 %v469, 1.442695
    %v491 = vpow.pop %v490
    %v492 = vmul.f32 %v470, 1.442695
    %v493 = vpow.pop %v492
    %v494 = vmul.f32 %v471, 1.442695
    %v495 = vpow.pop %v494
    %v496 = vmul.f32 %v472, 1.442695
    %v497 = vpow.pop %v496
    %v498 = vmul.f32 %v473, 1.442695
    %v499 = vpow.pop %v498
    %v500 = vmul.f32 %v474, 1.442695
    %v501 = vpow.pop %v500
    %v502 = vmul.f32 %v475, 1.442695
    %v503 = vpow.pop %v502
    %v504 = vmul.f32 %v476, 1.442695
    %v505 = vpow.pop %v504
    %v506 = vmul.f32 %v477, 1.442695
    %v507 = vpow.pop %v506
    %v508 = vmul.f32 %v478, 1.442695
    %v509 = vpow.pop %v508
    %v510 = vmul.f32 %v479, 1.442695
    %v511 = vpow.pop %v510
    %512 = vadd.xlane.f32.xlu0 %v481
    %v513 = vpop.xlane.xlu0 %512
    %514 = vadd.xlane.f32.xlu0 %v483
    %v515 = vpop.xlane.xlu0 %514
    %516 = vadd.xlane.f32.xlu0 %v485
    %v517 = vpop.xlane.xlu0 %516
    %518 = vadd.xlane.f32.xlu0 %v487
    %v519 = vpop.xlane.xlu0 %518
    %520 = vadd.xlane.f32.xlu0 %v489
    %v521 = vpop.xlane.xlu0 %520
    %522 = vadd.xlane.f32.xlu0 %v491
    %v523 = vpop.xlane.xlu0 %522
    %524 = vadd.xlane.f32.xlu0 %v493
    %v525 = vpop.xlane.xlu0 %524
    %526 = vadd.xlane.f32.xlu0 %v495
    %v527 = vpop.xlane.xlu0 %526
    %528 = vadd.xlane.f32.xlu0 %v497
    %v529 = vpop.xlane.xlu0 %528
    %530 = vadd.xlane.f32.xlu0 %v499
    %v531 = vpop.xlane.xlu0 %530
    %532 = vadd.xlane.f32.xlu0 %v501
    %v533 = vpop.xlane.xlu0 %532
    %534 = vadd.xlane.f32.xlu0 %v503
    %v535 = vpop.xlane.xlu0 %534
    %536 = vadd.xlane.f32.xlu0 %v505
    %v537 = vpop.xlane.xlu0 %536
    %538 = vadd.xlane.f32.xlu0 %v507
    %v539 = vpop.xlane.xlu0 %538
    %540 = vadd.xlane.f32.xlu0 %v509
    %v541 = vpop.xlane.xlu0 %540
    %542 = vadd.xlane.f32.xlu0 %v511
    %v543 = vpop.xlane.xlu0 %542
    %v544 = vlog2.pop %v513
    %v545 = vmul.f32 %v544, 0.6931472
    %v546 = vlog2.pop %v515
    %v547 = vmul.f32 %v546, 0.6931472
    %v548 = vlog2.pop %v517
    %v549 = vmul.f32 %v548, 0.6931472
    %v550 = vlog2.pop %v519
    %v551 = vmul.f32 %v550, 0.6931472
    %v552 = vlog2.pop %v521
    %v553 = vmul.f32 %v552, 0.6931472
    %v554 = vlog2.pop %v523
    %v555 = vmul.f32 %v554, 0.6931472
    %v556 = vlog2.pop %v525
    %v557 = vmul.f32 %v556, 0.6931472
    %v558 = vlog2.pop %v527
    %v559 = vmul.f32 %v558, 0.6931472
    %v560 = vlog2.pop %v529
    %v561 = vmul.f32 %v560, 0.6931472
    %v562 = vlog2.pop %v531
    %v563 = vmul.f32 %v562, 0.6931472
    %v564 = vlog2.pop %v533
    %v565 = vmul.f32 %v564, 0.6931472
    %v566 = vlog2.pop %v535
    %v567 = vmul.f32 %v566, 0.6931472
    %v568 = vlog2.pop %v537
    %v569 = vmul.f32 %v568, 0.6931472
    %v570 = vlog2.pop %v539
    %v571 = vmul.f32 %v570, 0.6931472
    %v572 = vlog2.pop %v541
    %v573 = vmul.f32 %v572, 0.6931472
    %v574 = vlog2.pop %v543
    %v575 = vmul.f32 %v574, 0.6931472
    %v576 = vadd.f32 %v545, %v433
    %v577 = vadd.f32 %v547, %v435
    %v578 = vadd.f32 %v549, %v437
    %v579 = vadd.f32 %v551, %v439
    %v580 = vadd.f32 %v553, %v441
    %v581 = vadd.f32 %v555, %v443
    %v582 = vadd.f32 %v557, %v445
    %v583 = vadd.f32 %v559, %v447
    %v584 = vadd.f32 %v561, %v449
    %v585 = vadd.f32 %v563, %v451
    %v586 = vadd.f32 %v565, %v453
    %v587 = vadd.f32 %v567, %v455
    %v588 = vadd.f32 %v569, %v457
    %v589 = vadd.f32 %v571, %v459
    %v590 = vadd.f32 %v573, %v461
    %v591 = vadd.f32 %v575, %v463
    %v592 = vsub.f32 %v416, %v576
    %v593 = vsub.f32 %v417, %v577
    %v594 = vsub.f32 %v418, %v578
    %v595 = vsub.f32 %v419, %v579
    %v596 = vsub.f32 %v420, %v580
    %v597 = vsub.f32 %v421, %v581
    %v598 = vsub.f32 %v422, %v582
    %v599 = vsub.f32 %v423, %v583
    %v600 = vsub.f32 %v424, %v584
    %v601 = vsub.f32 %v425, %v585
    %v602 = vsub.f32 %v426, %v586
    %v603 = vsub.f32 %v427, %v587
    %v604 = vsub.f32 %v428, %v588
    %v605 = vsub.f32 %v429, %v589
    %v606 = vsub.f32 %v430, %v590
    %v607 = vsub.f32 %v431, %v591
    %608 = vst [vmem:[%s4] sm:$0xff] %v592
    %609 = vst [vmem:[%s4 + $0x8] sm:$0xff] %v593
    %610 = vst [vmem:[%s4 + $0x10] sm:$0xff] %v594
    %611 = vst [vmem:[%s4 + $0x18] sm:$0xff] %v595
    %612 = vst [vmem:[%s4 + $0x20] sm:$0xff] %v596
    %613 = vst [vmem:[%s4 + $0x28] sm:$0xff] %v597
    %614 = vst [vmem:[%s4 + $0x30] sm:$0xff] %v598
    %615 = vst [vmem:[%s4 + $0x38] sm:$0xff] %v599
    %616 = vst [vmem:[%s4 + $0x40] sm:$0xff] %v600
    %617 = vst [vmem:[%s4 + $0x48] sm:$0xff] %v601
    %618 = vst [vmem:[%s4 + $0x50] sm:$0xff] %v602
    %619 = vst [vmem:[%s4 + $0x58] sm:$0xff] %v603
    %620 = vst [vmem:[%s4 + $0x60] sm:$0xff] %v604
    %621 = vst [vmem:[%s4 + $0x68] sm:$0xff] %v605
    %622 = vst [vmem:[%s4 + $0x70] sm:$0xff] %v606
    %623 = vst [vmem:[%s4 + $0x78] sm:$0xff] %v607
  $region25: #{gcn_forward.7} parent=0 // pred_fallthru
    _
  // Predicated region
  $region26: #{gcn_forward.7} parent=0 // pred_check
    _
  $region27: #{gcn_forward.7} parent=0 // pred_check_branch
    %625 = sbr.rel (0) target = $region29
  $region28: #{gcn_forward.7} parent=0 // pred_region
    _
  $region29: #{gcn_forward.7} parent=0 // pred_fallthru
    _
  // Predicated region
  $region30: #{gcn_forward.7} parent=0 // pred_check
    _
  $region31: #{gcn_forward.7} parent=0 // pred_check_branch
    %627 = sbr.rel (0) target = $region33
  $region32: #{gcn_forward.7} parent=0 // pred_region
    _
  $region33: #{gcn_forward.7} parent=0 // pred_fallthru
    _

</llo_original>
